<compile_context>
chip_gen: v5e
topology: v5e:2x2
jax: 0.10.0
libtpu: 0.0.40
codegen_flags: <defaults>
</compile_context>

<pallas_src>
import functools

import jax
import jax.numpy as jnp
from jax.experimental import pallas as pl
from jax.experimental.pallas import tpu as pltpu


def _layer_norm(x, gamma, beta, eps=1e-5):
    mu = jnp.mean(x, axis=-1, keepdims=True)
    var = jnp.mean((x - mu) ** 2, axis=-1, keepdims=True)
    return (x - mu) * jax.lax.rsqrt(var + eps) * gamma + beta


def _make_fft_block_kernel(*, num_heads, pad1, pad2, k1, k2):
    def kernel(mask_ref, x_ref, wqkv_ref, bqkv_ref, wo_ref, bo_ref,
               g1_ref, be1_ref, w1_ref, b1c_ref, w2_ref, b2c_ref,
               g2_ref, be2_ref, out_ref, oheads_ref):
        x = x_ref[...]                               # (S, E) f32 - one sequence
        S, E = x.shape
        hd = E // num_heads
        mask = mask_ref[...]                         # (S, S) additive f32 mask

        # ---- fused QKV projection (single wide MXU pass, bf16 operands, f32 acc)
        xb = x.astype(jnp.bfloat16)
        qkv = jnp.dot(xb, wqkv_ref[...],
                      preferred_element_type=jnp.float32) + bqkv_ref[...]   # (S, 3E)

        # ---- multi-head self-attention; each head writes its normalized output
        # into the head-concat layout scratch so the output projection is one
        # fused E-wide matmul after the loop.
        for h in range(num_heads):                    # static, small
            c = h * hd
            qh = qkv[:, c:c + hd].astype(jnp.bfloat16)
            kh = qkv[:, E + c:E + c + hd].astype(jnp.bfloat16)
            vh = qkv[:, 2 * E + c:2 * E + c + hd].astype(jnp.bfloat16)
            # q already carries the 1/sqrt(hd) scale (folded into Wq/bq).
            s = jax.lax.dot_general(qh, kh, (((1,), (1,)), ((), ())),
                                    preferred_element_type=jnp.float32) + mask
            m = jnp.max(s, axis=-1, keepdims=True)    # f32 softmax stats
            p = jnp.exp(s - m)
            l = jnp.sum(p, axis=-1, keepdims=True)    # (S, 1) f32
            oh = jnp.dot(p.astype(jnp.bfloat16), vh,
                         preferred_element_type=jnp.float32)
            oh = oh * pl.reciprocal(l, approx=False)  # exact; normalize after P@V
            oheads_ref[:, c:c + hd] = oh.astype(jnp.bfloat16)

        # ---- fused output projection: single (S,E)@(E,E) matmul over all heads
        y = jnp.dot(oheads_ref[...], wo_ref[...],
                    preferred_element_type=jnp.float32) + bo_ref[...]       # (S, E)
        x1 = x + _layer_norm(y, g1_ref[...], be1_ref[...])

        # Row index within the sequence (one sequence per grid step).
        t = jax.lax.broadcasted_iota(jnp.int32, (S, 1), 0)

        def shift_rows(a, off):
            # a'[r] = a[r + off]; zero where r + off falls outside [0, S)
            # (== 'same' zero padding; pltpu.roll uses the XLU slot).
            a = pltpu.roll(a, (-off) % S, axis=0)
            valid = (t + off >= 0) & (t + off < S)
            return jnp.where(valid, a, 0.0)

        # ---- Conv1d(E->H, k1): shift the (S,E) *input* per tap (E < H), concat
        # taps along lanes, one (S, k1*E)@(k1*E, H) matmul + ReLU.
        taps = []
        for j in range(k1):                           # static tap loop
            off = j - pad1
            taps.append(x1 if off == 0 else shift_rows(x1, off))
        xcat = jnp.concatenate(taps, axis=-1).astype(jnp.bfloat16)    # (S, k1*E)
        h1 = jnp.maximum(jnp.dot(xcat, w1_ref[...],
                                 preferred_element_type=jnp.float32)
                         + b1c_ref[...], 0.0)                          # (S, H)

        # ---- Conv1d(H->E, k2): per-tap matmul, shift the (S,E) *output* (E < H).
        h1b = h1.astype(jnp.bfloat16)
        acc = None
        for j in range(k2):                           # static tap loop
            off = j - pad2
            mj = jnp.dot(h1b, w2_ref[j], preferred_element_type=jnp.float32)
            if off != 0:
                mj = shift_rows(mj, off)
            acc = mj if acc is None else acc + mj
        y2 = acc + b2c_ref[...]

        # ---- (Dropout no-op in eval) + LayerNorm + residual
        out_ref[...] = x1 + _layer_norm(y2, g2_ref[...], be2_ref[...])

    return kernel


def fft_block_pallas(x, attn_mask, params, *, num_heads, pad1, pad2):
    """x: (B, S, E) f32, attn_mask: (S, S) f32 additive mask."""
    B, S, E = x.shape
    H, _, k1 = params["w1"].shape
    _, _, k2 = params["w2"].shape
    assert E % num_heads == 0, "num_heads must divide emb_dim"
    # shifted-matmul conv assumes 'same' sizing (stride 1, 2*pad == k-1)
    assert 2 * pad1 == k1 - 1 and 2 * pad2 == k2 - 1, "conv must be 'same'-sized"
    hd = E // num_heads
    scale = 1.0 / (hd ** 0.5)

    f32, bf16 = jnp.float32, jnp.bfloat16
    in_w, in_b = params["in_w"], params["in_b"]
    # Fuse QKV into one (E, 3E) weight; fold 1/sqrt(hd) into the Q projection.
    wqkv = jnp.concatenate(
        [in_w[:E].T * scale, in_w[E:2 * E].T, in_w[2 * E:].T], axis=1).astype(bf16)
    bqkv = jnp.concatenate(
        [in_b[:E] * scale, in_b[E:2 * E], in_b[2 * E:]]).reshape(1, 3 * E).astype(f32)
    wo = params["out_w"].T.astype(bf16)                   # (E, E)
    bo = params["out_b"].reshape(1, E).astype(f32)
    g1 = params["g1"].reshape(1, E).astype(f32)
    be1 = params["b1"].reshape(1, E).astype(f32)
    # Conv1 weights in (tap-major, in-channel-minor) layout for the fused tap matmul.
    w1 = jnp.transpose(params["w1"], (2, 1, 0)).reshape(k1 * E, H).astype(bf16)
    b1c = params["b1c"].reshape(1, H).astype(f32)
    w2 = jnp.transpose(params["w2"], (2, 1, 0)).astype(bf16)     # (k2, H, E)
    b2c = params["b2c"].reshape(1, E).astype(f32)
    g2 = params["g2"].reshape(1, E).astype(f32)
    be2 = params["b2"].reshape(1, E).astype(f32)

    x2d = x.reshape(B * S, E).astype(f32)      # wrapper-side layout plumbing
    mask = attn_mask.astype(f32)

    # Grid-invariant inputs: replicated block, single-buffered (fetched once,
    # no dead double-buffer VMEM).
    def rep(shape):
        n = len(shape)
        return pl.BlockSpec(shape, lambda i, n=n: (0,) * n,
                            pipeline_mode=pl.Buffered(1))

    kernel = _make_fft_block_kernel(num_heads=num_heads,
                                    pad1=pad1, pad2=pad2, k1=k1, k2=k2)

    # Per-step VMEM footprint: pipelined x/out blocks double-buffered, resident
    # weights single-buffered, plus the head-concat scratch; 2x headroom
    # + 4 MiB for compiler-internal scratch, floored at the 32 MiB default.
    nbytes = lambda a: a.size * a.dtype.itemsize
    resident = sum(nbytes(a) for a in
                   (mask, wqkv, bqkv, wo, bo, g1, be1, w1, b1c, w2, b2c, g2, be2))
    per_step = 2 * 2 * (S * E * 4) + resident + S * E * 2
    vmem_limit = int(min(max(32 * 1024 * 1024, 2 * per_step + (4 << 20)),
                         120 * 1024 * 1024))

    flops = B * (2 * S * E * 3 * E                    # QKV projection
                 + num_heads * 2 * 2 * S * S * hd     # scores + P@V
                 + 2 * S * E * E                      # output projection
                 + 2 * S * k1 * E * H                 # conv1 (fused taps)
                 + 2 * S * k2 * H * E)                # conv2
    cost = pl.CostEstimate(flops=flops,
                           transcendentals=B * num_heads * S * S,
                           bytes_accessed=2 * nbytes(x2d) + resident)

    out2d = pl.pallas_call(
        kernel,
        out_shape=jax.ShapeDtypeStruct((B * S, E), jnp.float32),
        grid_spec=pltpu.PrefetchScalarGridSpec(
            num_scalar_prefetch=0,
            grid=(B,),                                        # one sequence / step
            in_specs=[
                rep((S, S)),                                  # additive attn mask
                pl.BlockSpec((S, E), lambda i: (i, 0)),       # x rows (this sequence)
                rep((E, 3 * E)), rep((1, 3 * E)),             # fused Wqkv (scaled), bqkv
                rep((E, E)), rep((1, E)),                     # Wo^T, bo
                rep((1, E)), rep((1, E)),                     # LN1 gamma, beta
                rep((k1 * E, H)), rep((1, H)),                # conv1 W (tap-concat), b
                rep((k2, H, E)), rep((1, E)),                 # conv2 W, b
                rep((1, E)), rep((1, E)),                     # LN2 gamma, beta
            ],
            out_specs=pl.BlockSpec((S, E), lambda i: (i, 0)),
            scratch_shapes=[pltpu.VMEM((S, E), jnp.bfloat16)],  # head-concat attn out
        ),
        compiler_params=pltpu.CompilerParams(
            dimension_semantics=("parallel",),
            vmem_limit_bytes=vmem_limit,
        ),
        cost_estimate=cost,
    )(mask, x2d, wqkv, bqkv, wo, bo, g1, be1, w1, b1c, w2, b2c, g2, be2)

    return out2d.reshape(B, S, E)


# ---------------- pure-JAX reference (PyTorch eval-mode, f32 semantics) ----------------
def fft_block_reference(x, attn_mask, params, *, num_heads, pad1, pad2):
    B, S, E = x.shape
    hd = E // num_heads
    qkv = x @ params["in_w"].T + params["in_b"]
    q, k, v = qkv[..., :E], qkv[..., E:2 * E], qkv[..., 2 * E:]

    def heads(t):
        return t.reshape(B, S, num_heads, hd).transpose(0, 2, 1, 3)

    qh, kh, vh = heads(q), heads(k), heads(v)
    scores = qh @ kh.transpose(0, 1, 3, 2) / jnp.sqrt(jnp.float32(hd)) + attn_mask
    attn = jax.nn.softmax(scores, axis=-1)
    o = (attn @ vh).transpose(0, 2, 1, 3).reshape(B, S, E)
    o = o @ params["out_w"].T + params["out_b"]

    def ln(t, g, b):
        mu = t.mean(-1, keepdims=True)
        var = ((t - mu) ** 2).mean(-1, keepdims=True)
        return (t - mu) / jnp.sqrt(var + 1e-5) * g + b

    x1 = x + ln(o, params["g1"], params["b1"])

    xt = x1.transpose(0, 2, 1)  # (B, E, S)  NCW like PyTorch
    h = jax.lax.conv_general_dilated(xt, params["w1"], (1,), [(pad1, pad1)],
                                     dimension_numbers=("NCH", "OIH", "NCH"))
    h = jnp.maximum(h + params["b1c"][None, :, None], 0.0)
    y = jax.lax.conv_general_dilated(h, params["w2"], (1,), [(pad2, pad2)],
                                     dimension_numbers=("NCH", "OIH", "NCH"))
    y = (y + params["b2c"][None, :, None]).transpose(0, 2, 1)
    return x1 + ln(y, params["g2"], params["b2"])


if __name__ == "__main__":
    B, S, E = 2, 16, 32
    NUM_HEADS = 2
    HIDDEN = 64
    K1, PAD1 = 3, 1
    K2, PAD2 = 3, 1

    key = jax.random.PRNGKey(0)
    ks = jax.random.split(key, 12)
    params = {
        "in_w": 0.1 * jax.random.normal(ks[0], (3 * E, E), jnp.float32),
        "in_b": 0.1 * jax.random.normal(ks[1], (3 * E,), jnp.float32),
        "out_w": 0.1 * jax.random.normal(ks[2], (E, E), jnp.float32),
        "out_b": 0.1 * jax.random.normal(ks[3], (E,), jnp.float32),
        "g1": 1.0 + 0.1 * jax.random.normal(ks[4], (E,), jnp.float32),
        "b1": 0.1 * jax.random.normal(ks[5], (E,), jnp.float32),
        "w1": 0.1 * jax.random.normal(ks[6], (HIDDEN, E, K1), jnp.float32),
        "b1c": 0.1 * jax.random.normal(ks[7], (HIDDEN,), jnp.float32),
        "w2": 0.1 * jax.random.normal(ks[8], (E, HIDDEN, K2), jnp.float32),
        "b2c": 0.1 * jax.random.normal(ks[9], (E,), jnp.float32),
        "g2": 1.0 + 0.1 * jax.random.normal(ks[10], (E,), jnp.float32),
        "b2": 0.1 * jax.random.normal(ks[11], (E,), jnp.float32),
    }

    kx, km = jax.random.split(jax.random.PRNGKey(1))
    x = jax.random.normal(kx, (B, S, E), jnp.float32)
    # additive float attention mask: causal (-1e9 above diagonal)
    attn_mask = jnp.where(jnp.triu(jnp.ones((S, S), jnp.bool_), k=1),
                          jnp.float32(-1e9), jnp.float32(0.0))

    run = jax.jit(functools.partial(fft_block_pallas, num_heads=NUM_HEADS,
                                    pad1=PAD1, pad2=PAD2))
    out = jax.block_until_ready(run(x, attn_mask, params))

    ref = fft_block_reference(x, attn_mask, params,
                              num_heads=NUM_HEADS, pad1=PAD1, pad2=PAD2)
    assert out.shape == (B, S, E)
    # bf16 MXU operands => compare against the f32 reference with a
    # bf16-appropriate tolerance.
    max_diff = jnp.max(jnp.abs(out - ref))
    assert jnp.allclose(out, ref, atol=5e-2, rtol=5e-2), \
        f"max abs diff {max_diff}"
    print("KERNEL_OK")
</pallas_src>

<mosaic_0001>
module attributes {stable_mosaic.version = 11 : i64} {
  func.func @kernel(%arg0: i32, %arg1: memref<16x16xf32, #tpu.memory_space<vmem>>, %arg2: memref<16x32xf32, #tpu.memory_space<vmem>>, %arg3: memref<32x96xbf16, #tpu.memory_space<vmem>>, %arg4: memref<1x96xf32, #tpu.memory_space<vmem>>, %arg5: memref<32x32xbf16, #tpu.memory_space<vmem>>, %arg6: memref<1x32xf32, #tpu.memory_space<vmem>>, %arg7: memref<1x32xf32, #tpu.memory_space<vmem>>, %arg8: memref<1x32xf32, #tpu.memory_space<vmem>>, %arg9: memref<96x64xbf16, #tpu.memory_space<vmem>>, %arg10: memref<1x64xf32, #tpu.memory_space<vmem>>, %arg11: memref<3x64x32xbf16, #tpu.memory_space<vmem>>, %arg12: memref<1x32xf32, #tpu.memory_space<vmem>>, %arg13: memref<1x32xf32, #tpu.memory_space<vmem>>, %arg14: memref<1x32xf32, #tpu.memory_space<vmem>>, %arg15: memref<16x32xf32, #tpu.memory_space<vmem>>, %arg16: memref<16x32xbf16, #tpu.memory_space<vmem>>) attributes {dimension_semantics = [#tpu.dimension_semantics<parallel>], iteration_bounds = array<i64: 2>, scalar_prefetch = 0 : i64, scratch_operands = 1 : i64, tpu.core_type = #tpu.core_type<tc>, window_params = [{pipeline_mode = #tpu.pipeline_mode<synchronous>, transform_indices = @transform_0, window_bounds = array<i64: 16, 16>}, {transform_indices = @transform_1, window_bounds = array<i64: 16, 32>}, {pipeline_mode = #tpu.pipeline_mode<synchronous>, transform_indices = @transform_2, window_bounds = array<i64: 32, 96>}, {pipeline_mode = #tpu.pipeline_mode<synchronous>, transform_indices = @transform_3, window_bounds = array<i64: 1, 96>}, {pipeline_mode = #tpu.pipeline_mode<synchronous>, transform_indices = @transform_4, window_bounds = array<i64: 32, 32>}, {pipeline_mode = #tpu.pipeline_mode<synchronous>, transform_indices = @transform_5, window_bounds = array<i64: 1, 32>}, {pipeline_mode = #tpu.pipeline_mode<synchronous>, transform_indices = @transform_6, window_bounds = array<i64: 1, 32>}, {pipeline_mode = #tpu.pipeline_mode<synchronous>, transform_indices = @transform_7, window_bounds = array<i64: 1, 32>}, {pipeline_mode = #tpu.pipeline_mode<synchronous>, transform_indices = @transform_8, window_bounds = array<i64: 96, 64>}, {pipeline_mode = #tpu.pipeline_mode<synchronous>, transform_indices = @transform_9, window_bounds = array<i64: 1, 64>}, {pipeline_mode = #tpu.pipeline_mode<synchronous>, transform_indices = @transform_10, window_bounds = array<i64: 3, 64, 32>}, {pipeline_mode = #tpu.pipeline_mode<synchronous>, transform_indices = @transform_11, window_bounds = array<i64: 1, 32>}, {pipeline_mode = #tpu.pipeline_mode<synchronous>, transform_indices = @transform_12, window_bounds = array<i64: 1, 32>}, {pipeline_mode = #tpu.pipeline_mode<synchronous>, transform_indices = @transform_13, window_bounds = array<i64: 1, 32>}, {transform_indices = @transform_14, window_bounds = array<i64: 16, 32>}]} {
    %c0 = arith.constant 0 : index
    %c0_0 = arith.constant 0 : index
    %0 = vector.load %arg2[%c0, %c0_0] : memref<16x32xf32, #tpu.memory_space<vmem>>, vector<16x32xf32>
    %c0_1 = arith.constant 0 : index
    %c0_2 = arith.constant 0 : index
    %1 = vector.load %arg1[%c0_1, %c0_2] : memref<16x16xf32, #tpu.memory_space<vmem>>, vector<16x16xf32>
    %2 = arith.truncf %0 : vector<16x32xf32> to vector<16x32xbf16>
    %c0_3 = arith.constant 0 : index
    %c0_4 = arith.constant 0 : index
    %3 = vector.load %arg3[%c0_3, %c0_4] : memref<32x96xbf16, #tpu.memory_space<vmem>>, vector<32x96xbf16>
    %cst = arith.constant dense<0.000000e+00> : vector<16x96xf32>
    %4 = tpu.matmul %2, %3, %cst {dimension_numbers = #tpu.dot_dimension_numbers<[1], [0], [0], [1], [0, 0, 1, 1], [], []>} : vector<16x32xbf16>, vector<32x96xbf16>, vector<16x96xf32> -> vector<16x96xf32>
    %c0_5 = arith.constant 0 : index
    %c0_6 = arith.constant 0 : index
    %5 = vector.load %arg4[%c0_5, %c0_6] : memref<1x96xf32, #tpu.memory_space<vmem>>, vector<1x96xf32>
    %6 = vector.broadcast %5 : vector<1x96xf32> to vector<16x96xf32>
    %7 = arith.addf %4, %6 : vector<16x96xf32>
    %8 = vector.extract_strided_slice %7 {offsets = [0, 0], sizes = [16, 16], strides = [1, 1]} : vector<16x96xf32> to vector<16x16xf32>
    %9 = arith.truncf %8 : vector<16x16xf32> to vector<16x16xbf16>
    %10 = vector.extract_strided_slice %7 {offsets = [0, 32], sizes = [16, 16], strides = [1, 1]} : vector<16x96xf32> to vector<16x16xf32>
    %11 = arith.truncf %10 : vector<16x16xf32> to vector<16x16xbf16>
    %12 = vector.extract_strided_slice %7 {offsets = [0, 64], sizes = [16, 16], strides = [1, 1]} : vector<16x96xf32> to vector<16x16xf32>
    %13 = arith.truncf %12 : vector<16x16xf32> to vector<16x16xbf16>
    %cst_7 = arith.constant dense<0.000000e+00> : vector<16x16xf32>
    %14 = tpu.matmul %9, %11, %cst_7 {dimension_numbers = #tpu.dot_dimension_numbers<[1], [1], [0], [0], [0, 0, 1, 0], [], []>} : vector<16x16xbf16>, vector<16x16xbf16>, vector<16x16xf32> -> vector<16x16xf32>
    %15 = arith.addf %14, %1 : vector<16x16xf32>
    %cst_8 = arith.constant dense<0xFF800000> : vector<16xf32>
    %16 = vector.multi_reduction <maximumf>, %15, %cst_8 [1] : vector<16x16xf32> to vector<16xf32>
    %17 = vector.shape_cast %16 : vector<16xf32> to vector<16x1xf32>
    %18 = vector.broadcast %17 : vector<16x1xf32> to vector<16x16xf32>
    %19 = arith.subf %15, %18 : vector<16x16xf32>
    %20 = math.exp %19 : vector<16x16xf32>
    %cst_9 = arith.constant dense<0.000000e+00> : vector<16xf32>
    %21 = vector.multi_reduction <add>, %20, %cst_9 [1] : vector<16x16xf32> to vector<16xf32>
    %22 = vector.shape_cast %21 : vector<16xf32> to vector<16x1xf32>
    %23 = arith.truncf %20 : vector<16x16xf32> to vector<16x16xbf16>
    %cst_10 = arith.constant dense<0.000000e+00> : vector<16x16xf32>
    %24 = tpu.matmul %23, %13, %cst_10 {dimension_numbers = #tpu.dot_dimension_numbers<[1], [0], [0], [1], [0, 0, 1, 1], [], []>} : vector<16x16xbf16>, vector<16x16xbf16>, vector<16x16xf32> -> vector<16x16xf32>
    %25 = tpu.reciprocal %22 : vector<16x1xf32> -> vector<16x1xf32>
    %26 = vector.broadcast %25 : vector<16x1xf32> to vector<16x16xf32>
    %27 = arith.mulf %24, %26 : vector<16x16xf32>
    %28 = arith.truncf %27 : vector<16x16xf32> to vector<16x16xbf16>
    %c0_11 = arith.constant 0 : index
    %c0_12 = arith.constant 0 : index
    %29 = vector.load %arg16[%c0_11, %c0_12] : memref<16x32xbf16, #tpu.memory_space<vmem>>, vector<16x16xbf16>
    tpu.vector_store %arg16[%c0_11, %c0_12], %28 {strides = array<i32>} : memref<16x32xbf16, #tpu.memory_space<vmem>>, vector<16x16xbf16>,
    %30 = vector.extract_strided_slice %7 {offsets = [0, 16], sizes = [16, 16], strides = [1, 1]} : vector<16x96xf32> to vector<16x16xf32>
    %31 = arith.truncf %30 : vector<16x16xf32> to vector<16x16xbf16>
    %32 = vector.extract_strided_slice %7 {offsets = [0, 48], sizes = [16, 16], strides = [1, 1]} : vector<16x96xf32> to vector<16x16xf32>
    %33 = arith.truncf %32 : vector<16x16xf32> to vector<16x16xbf16>
    %34 = vector.extract_strided_slice %7 {offsets = [0, 80], sizes = [16, 16], strides = [1, 1]} : vector<16x96xf32> to vector<16x16xf32>
    %35 = arith.truncf %34 : vector<16x16xf32> to vector<16x16xbf16>
    %cst_13 = arith.constant dense<0.000000e+00> : vector<16x16xf32>
    %36 = tpu.matmul %31, %33, %cst_13 {dimension_numbers = #tpu.dot_dimension_numbers<[1], [1], [0], [0], [0, 0, 1, 0], [], []>} : vector<16x16xbf16>, vector<16x16xbf16>, vector<16x16xf32> -> vector<16x16xf32>
    %37 = arith.addf %36, %1 : vector<16x16xf32>
    %cst_14 = arith.constant dense<0xFF800000> : vector<16xf32>
    %38 = vector.multi_reduction <maximumf>, %37, %cst_14 [1] : vector<16x16xf32> to vector<16xf32>
    %39 = vector.shape_cast %38 : vector<16xf32> to vector<16x1xf32>
    %40 = vector.broadcast %39 : vector<16x1xf32> to vector<16x16xf32>
    %41 = arith.subf %37, %40 : vector<16x16xf32>
    %42 = math.exp %41 : vector<16x16xf32>
    %cst_15 = arith.constant dense<0.000000e+00> : vector<16xf32>
    %43 = vector.multi_reduction <add>, %42, %cst_15 [1] : vector<16x16xf32> to vector<16xf32>
    %44 = vector.shape_cast %43 : vector<16xf32> to vector<16x1xf32>
    %45 = arith.truncf %42 : vector<16x16xf32> to vector<16x16xbf16>
    %cst_16 = arith.constant dense<0.000000e+00> : vector<16x16xf32>
    %46 = tpu.matmul %45, %35, %cst_16 {dimension_numbers = #tpu.dot_dimension_numbers<[1], [0], [0], [1], [0, 0, 1, 1], [], []>} : vector<16x16xbf16>, vector<16x16xbf16>, vector<16x16xf32> -> vector<16x16xf32>
    %47 = tpu.reciprocal %44 : vector<16x1xf32> -> vector<16x1xf32>
    %48 = vector.broadcast %47 : vector<16x1xf32> to vector<16x16xf32>
    %49 = arith.mulf %46, %48 : vector<16x16xf32>
    %50 = arith.truncf %49 : vector<16x16xf32> to vector<16x16xbf16>
    %c0_17 = arith.constant 0 : index
    %c16 = arith.constant 16 : index
    %51 = vector.load %arg16[%c0_17, %c16] : memref<16x32xbf16, #tpu.memory_space<vmem>>, vector<16x16xbf16>
    tpu.vector_store %arg16[%c0_17, %c16], %50 {strides = array<i32>} : memref<16x32xbf16, #tpu.memory_space<vmem>>, vector<16x16xbf16>,
    %c0_18 = arith.constant 0 : index
    %c0_19 = arith.constant 0 : index
    %52 = vector.load %arg16[%c0_18, %c0_19] : memref<16x32xbf16, #tpu.memory_space<vmem>>, vector<16x32xbf16>
    %c0_20 = arith.constant 0 : index
    %c0_21 = arith.constant 0 : index
    %53 = vector.load %arg5[%c0_20, %c0_21] : memref<32x32xbf16, #tpu.memory_space<vmem>>, vector<32x32xbf16>
    %cst_22 = arith.constant dense<0.000000e+00> : vector<16x32xf32>
    %54 = tpu.matmul %52, %53, %cst_22 {dimension_numbers = #tpu.dot_dimension_numbers<[1], [0], [0], [1], [0, 0, 1, 1], [], []>} : vector<16x32xbf16>, vector<32x32xbf16>, vector<16x32xf32> -> vector<16x32xf32>
    %c0_23 = arith.constant 0 : index
    %c0_24 = arith.constant 0 : index
    %55 = vector.load %arg6[%c0_23, %c0_24] : memref<1x32xf32, #tpu.memory_space<vmem>>, vector<1x32xf32>
    %56 = vector.broadcast %55 : vector<1x32xf32> to vector<16x32xf32>
    %57 = arith.addf %54, %56 : vector<16x32xf32>
    %c0_25 = arith.constant 0 : index
    %c0_26 = arith.constant 0 : index
    %58 = vector.load %arg7[%c0_25, %c0_26] : memref<1x32xf32, #tpu.memory_space<vmem>>, vector<1x32xf32>
    %c0_27 = arith.constant 0 : index
    %c0_28 = arith.constant 0 : index
    %59 = vector.load %arg8[%c0_27, %c0_28] : memref<1x32xf32, #tpu.memory_space<vmem>>, vector<1x32xf32>
    %cst_29 = arith.constant dense<0.000000e+00> : vector<16xf32>
    %60 = vector.multi_reduction <add>, %57, %cst_29 [1] : vector<16x32xf32> to vector<16xf32>
    %61 = vector.shape_cast %60 : vector<16xf32> to vector<16x1xf32>
    %cst_30 = arith.constant 3.200000e+01 : f32
    %62 = vector.broadcast %cst_30 : f32 to vector<16x1xf32>
    %63 = arith.divf %61, %62 : vector<16x1xf32>
    %64 = vector.broadcast %63 : vector<16x1xf32> to vector<16x32xf32>
    %65 = arith.subf %57, %64 : vector<16x32xf32>
    %66 = arith.mulf %65, %65 : vector<16x32xf32>
    %cst_31 = arith.constant dense<0.000000e+00> : vector<16xf32>
    %67 = vector.multi_reduction <add>, %66, %cst_31 [1] : vector<16x32xf32> to vector<16xf32>
    %68 = vector.shape_cast %67 : vector<16xf32> to vector<16x1xf32>
    %cst_32 = arith.constant 3.200000e+01 : f32
    %69 = vector.broadcast %cst_32 : f32 to vector<16x1xf32>
    %70 = arith.divf %68, %69 : vector<16x1xf32>
    %71 = vector.broadcast %63 : vector<16x1xf32> to vector<16x32xf32>
    %72 = arith.subf %57, %71 : vector<16x32xf32>
    %cst_33 = arith.constant 9.99999974E-6 : f32
    %73 = vector.broadcast %cst_33 : f32 to vector<16x1xf32>
    %74 = arith.addf %70, %73 : vector<16x1xf32>
    %75 = math.rsqrt %74 : vector<16x1xf32>
    %76 = vector.broadcast %75 : vector<16x1xf32> to vector<16x32xf32>
    %77 = arith.mulf %72, %76 : vector<16x32xf32>
    %78 = vector.broadcast %58 : vector<1x32xf32> to vector<16x32xf32>
    %79 = arith.mulf %77, %78 : vector<16x32xf32>
    %80 = vector.broadcast %59 : vector<1x32xf32> to vector<16x32xf32>
    %81 = arith.addf %79, %80 : vector<16x32xf32>
    %82 = arith.addf %0, %81 : vector<16x32xf32>
    %83 = tpu.iota {dimensions = array<i32: 0>} : vector<16x1xi32>
    %c1_i32 = arith.constant 1 : i32
    %84 = tpu.dynamic_rotate %82 by %c1_i32 dim 0 : vector<16x32xf32>, i32 -> vector<16x32xf32>
    %c-1_i32 = arith.constant -1 : i32
    %85 = vector.broadcast %c-1_i32 : i32 to vector<16x1xi32>
    %86 = arith.addi %83, %85 : vector<16x1xi32>
    %c0_i32 = arith.constant 0 : i32
    %87 = vector.broadcast %c0_i32 : i32 to vector<16x1xi32>
    %88 = arith.cmpi sge, %86, %87 : vector<16x1xi32>
    %c-1_i32_34 = arith.constant -1 : i32
    %89 = vector.broadcast %c-1_i32_34 : i32 to vector<16x1xi32>
    %90 = arith.addi %83, %89 : vector<16x1xi32>
    %c16_i32 = arith.constant 16 : i32
    %91 = vector.broadcast %c16_i32 : i32 to vector<16x1xi32>
    %92 = arith.cmpi slt, %90, %91 : vector<16x1xi32>
    %93 = arith.andi %88, %92 : vector<16x1xi1>
    %cst_35 = arith.constant 0.000000e+00 : f32
    %94 = vector.shape_cast %93 : vector<16x1xi1> to vector<16x1xi1>
    %95 = vector.broadcast %94 : vector<16x1xi1> to vector<16x32xi1>
    %96 = vector.broadcast %cst_35 : f32 to vector<16x32xf32>
    %97 = arith.select %95, %84, %96 : vector<16x32xi1>, vector<16x32xf32>
    %c15_i32 = arith.constant 15 : i32
    %98 = tpu.dynamic_rotate %82 by %c15_i32 dim 0 : vector<16x32xf32>, i32 -> vector<16x32xf32>
    %c1_i32_36 = arith.constant 1 : i32
    %99 = vector.broadcast %c1_i32_36 : i32 to vector<16x1xi32>
    %100 = arith.addi %83, %99 : vector<16x1xi32>
    %c0_i32_37 = arith.constant 0 : i32
    %101 = vector.broadcast %c0_i32_37 : i32 to vector<16x1xi32>
    %102 = arith.cmpi sge, %100, %101 : vector<16x1xi32>
    %c1_i32_38 = arith.constant 1 : i32
    %103 = vector.broadcast %c1_i32_38 : i32 to vector<16x1xi32>
    %104 = arith.addi %83, %103 : vector<16x1xi32>
    %c16_i32_39 = arith.constant 16 : i32
    %105 = vector.broadcast %c16_i32_39 : i32 to vector<16x1xi32>
    %106 = arith.cmpi slt, %104, %105 : vector<16x1xi32>
    %107 = arith.andi %102, %106 : vector<16x1xi1>
    %cst_40 = arith.constant 0.000000e+00 : f32
    %108 = vector.shape_cast %107 : vector<16x1xi1> to vector<16x1xi1>
    %109 = vector.broadcast %108 : vector<16x1xi1> to vector<16x32xi1>
    %110 = vector.broadcast %cst_40 : f32 to vector<16x32xf32>
    %111 = arith.select %109, %98, %110 : vector<16x32xi1>, vector<16x32xf32>
    %112 = tpu.concatenate %97, %82, %111 in 1 : vector<16x32xf32>, vector<16x32xf32>, vector<16x32xf32> -> vector<16x96xf32>
    %113 = arith.truncf %112 : vector<16x96xf32> to vector<16x96xbf16>
    %c0_41 = arith.constant 0 : index
    %c0_42 = arith.constant 0 : index
    %114 = vector.load %arg9[%c0_41, %c0_42] : memref<96x64xbf16, #tpu.memory_space<vmem>>, vector<96x64xbf16>
    %cst_43 = arith.constant dense<0.000000e+00> : vector<16x64xf32>
    %115 = tpu.matmul %113, %114, %cst_43 {dimension_numbers = #tpu.dot_dimension_numbers<[1], [0], [0], [1], [0, 0, 1, 1], [], []>} : vector<16x96xbf16>, vector<96x64xbf16>, vector<16x64xf32> -> vector<16x64xf32>
    %c0_44 = arith.constant 0 : index
    %c0_45 = arith.constant 0 : index
    %116 = vector.load %arg10[%c0_44, %c0_45] : memref<1x64xf32, #tpu.memory_space<vmem>>, vector<1x64xf32>
    %117 = vector.broadcast %116 : vector<1x64xf32> to vector<16x64xf32>
    %118 = arith.addf %115, %117 : vector<16x64xf32>
    %cst_46 = arith.constant 0.000000e+00 : f32
    %119 = vector.broadcast %cst_46 : f32 to vector<16x64xf32>
    %120 = arith.maximumf %118, %119 : vector<16x64xf32>
    %121 = arith.truncf %120 : vector<16x64xf32> to vector<16x64xbf16>
    %c0_47 = arith.constant 0 : index
    %c0_48 = arith.constant 0 : index
    %c0_49 = arith.constant 0 : index
    %122 = vector.load %arg11[%c0_47, %c0_48, %c0_49] : memref<3x64x32xbf16, #tpu.memory_space<vmem>>, vector<1x64x32xbf16>
    %123 = vector.shape_cast %122 : vector<1x64x32xbf16> to vector<64x32xbf16>
    %cst_50 = arith.constant dense<0.000000e+00> : vector<16x32xf32>
    %124 = tpu.matmul %121, %123, %cst_50 {dimension_numbers = #tpu.dot_dimension_numbers<[1], [0], [0], [1], [0, 0, 1, 1], [], []>} : vector<16x64xbf16>, vector<64x32xbf16>, vector<16x32xf32> -> vector<16x32xf32>
    %c1_i32_51 = arith.constant 1 : i32
    %125 = tpu.dynamic_rotate %124 by %c1_i32_51 dim 0 : vector<16x32xf32>, i32 -> vector<16x32xf32>
    %c-1_i32_52 = arith.constant -1 : i32
    %126 = vector.broadcast %c-1_i32_52 : i32 to vector<16x1xi32>
    %127 = arith.addi %83, %126 : vector<16x1xi32>
    %c0_i32_53 = arith.constant 0 : i32
    %128 = vector.broadcast %c0_i32_53 : i32 to vector<16x1xi32>
    %129 = arith.cmpi sge, %127, %128 : vector<16x1xi32>
    %c-1_i32_54 = arith.constant -1 : i32
    %130 = vector.broadcast %c-1_i32_54 : i32 to vector<16x1xi32>
    %131 = arith.addi %83, %130 : vector<16x1xi32>
    %c16_i32_55 = arith.constant 16 : i32
    %132 = vector.broadcast %c16_i32_55 : i32 to vector<16x1xi32>
    %133 = arith.cmpi slt, %131, %132 : vector<16x1xi32>
    %134 = arith.andi %129, %133 : vector<16x1xi1>
    %cst_56 = arith.constant 0.000000e+00 : f32
    %135 = vector.shape_cast %134 : vector<16x1xi1> to vector<16x1xi1>
    %136 = vector.broadcast %135 : vector<16x1xi1> to vector<16x32xi1>
    %137 = vector.broadcast %cst_56 : f32 to vector<16x32xf32>
    %138 = arith.select %136, %125, %137 : vector<16x32xi1>, vector<16x32xf32>
    %c1 = arith.constant 1 : index
    %c0_57 = arith.constant 0 : index
    %c0_58 = arith.constant 0 : index
    %139 = vector.load %arg11[%c1, %c0_57, %c0_58] : memref<3x64x32xbf16, #tpu.memory_space<vmem>>, vector<1x64x32xbf16>
    %140 = vector.shape_cast %139 : vector<1x64x32xbf16> to vector<64x32xbf16>
    %cst_59 = arith.constant dense<0.000000e+00> : vector<16x32xf32>
    %141 = tpu.matmul %121, %140, %cst_59 {dimension_numbers = #tpu.dot_dimension_numbers<[1], [0], [0], [1], [0, 0, 1, 1], [], []>} : vector<16x64xbf16>, vector<64x32xbf16>, vector<16x32xf32> -> vector<16x32xf32>
    %142 = arith.addf %138, %141 : vector<16x32xf32>
    %c2 = arith.constant 2 : index
    %c0_60 = arith.constant 0 : index
    %c0_61 = arith.constant 0 : index
    %143 = vector.load %arg11[%c2, %c0_60, %c0_61] : memref<3x64x32xbf16, #tpu.memory_space<vmem>>, vector<1x64x32xbf16>
    %144 = vector.shape_cast %143 : vector<1x64x32xbf16> to vector<64x32xbf16>
    %cst_62 = arith.constant dense<0.000000e+00> : vector<16x32xf32>
    %145 = tpu.matmul %121, %144, %cst_62 {dimension_numbers = #tpu.dot_dimension_numbers<[1], [0], [0], [1], [0, 0, 1, 1], [], []>} : vector<16x64xbf16>, vector<64x32xbf16>, vector<16x32xf32> -> vector<16x32xf32>
    %c15_i32_63 = arith.constant 15 : i32
    %146 = tpu.dynamic_rotate %145 by %c15_i32_63 dim 0 : vector<16x32xf32>, i32 -> vector<16x32xf32>
    %c1_i32_64 = arith.constant 1 : i32
    %147 = vector.broadcast %c1_i32_64 : i32 to vector<16x1xi32>
    %148 = arith.addi %83, %147 : vector<16x1xi32>
    %c0_i32_65 = arith.constant 0 : i32
    %149 = vector.broadcast %c0_i32_65 : i32 to vector<16x1xi32>
    %150 = arith.cmpi sge, %148, %149 : vector<16x1xi32>
    %c1_i32_66 = arith.constant 1 : i32
    %151 = vector.broadcast %c1_i32_66 : i32 to vector<16x1xi32>
    %152 = arith.addi %83, %151 : vector<16x1xi32>
    %c16_i32_67 = arith.constant 16 : i32
    %153 = vector.broadcast %c16_i32_67 : i32 to vector<16x1xi32>
    %154 = arith.cmpi slt, %152, %153 : vector<16x1xi32>
    %155 = arith.andi %150, %154 : vector<16x1xi1>
    %cst_68 = arith.constant 0.000000e+00 : f32
    %156 = vector.shape_cast %155 : vector<16x1xi1> to vector<16x1xi1>
    %157 = vector.broadcast %156 : vector<16x1xi1> to vector<16x32xi1>
    %158 = vector.broadcast %cst_68 : f32 to vector<16x32xf32>
    %159 = arith.select %157, %146, %158 : vector<16x32xi1>, vector<16x32xf32>
    %160 = arith.addf %142, %159 : vector<16x32xf32>
    %c0_69 = arith.constant 0 : index
    %c0_70 = arith.constant 0 : index
    %161 = vector.load %arg12[%c0_69, %c0_70] : memref<1x32xf32, #tpu.memory_space<vmem>>, vector<1x32xf32>
    %162 = vector.broadcast %161 : vector<1x32xf32> to vector<16x32xf32>
    %163 = arith.addf %160, %162 : vector<16x32xf32>
    %c0_71 = arith.constant 0 : index
    %c0_72 = arith.constant 0 : index
    %164 = vector.load %arg13[%c0_71, %c0_72] : memref<1x32xf32, #tpu.memory_space<vmem>>, vector<1x32xf32>
    %c0_73 = arith.constant 0 : index
    %c0_74 = arith.constant 0 : index
    %165 = vector.load %arg14[%c0_73, %c0_74] : memref<1x32xf32, #tpu.memory_space<vmem>>, vector<1x32xf32>
    %cst_75 = arith.constant dense<0.000000e+00> : vector<16xf32>
    %166 = vector.multi_reduction <add>, %163, %cst_75 [1] : vector<16x32xf32> to vector<16xf32>
    %167 = vector.shape_cast %166 : vector<16xf32> to vector<16x1xf32>
    %cst_76 = arith.constant 3.200000e+01 : f32
    %168 = vector.broadcast %cst_76 : f32 to vector<16x1xf32>
    %169 = arith.divf %167, %168 : vector<16x1xf32>
    %170 = vector.broadcast %169 : vector<16x1xf32> to vector<16x32xf32>
    %171 = arith.subf %163, %170 : vector<16x32xf32>
    %172 = arith.mulf %171, %171 : vector<16x32xf32>
    %cst_77 = arith.constant dense<0.000000e+00> : vector<16xf32>
    %173 = vector.multi_reduction <add>, %172, %cst_77 [1] : vector<16x32xf32> to vector<16xf32>
    %174 = vector.shape_cast %173 : vector<16xf32> to vector<16x1xf32>
    %cst_78 = arith.constant 3.200000e+01 : f32
    %175 = vector.broadcast %cst_78 : f32 to vector<16x1xf32>
    %176 = arith.divf %174, %175 : vector<16x1xf32>
    %177 = vector.broadcast %169 : vector<16x1xf32> to vector<16x32xf32>
    %178 = arith.subf %163, %177 : vector<16x32xf32>
    %cst_79 = arith.constant 9.99999974E-6 : f32
    %179 = vector.broadcast %cst_79 : f32 to vector<16x1xf32>
    %180 = arith.addf %176, %179 : vector<16x1xf32>
    %181 = math.rsqrt %180 : vector<16x1xf32>
    %182 = vector.broadcast %181 : vector<16x1xf32> to vector<16x32xf32>
    %183 = arith.mulf %178, %182 : vector<16x32xf32>
    %184 = vector.broadcast %164 : vector<1x32xf32> to vector<16x32xf32>
    %185 = arith.mulf %183, %184 : vector<16x32xf32>
    %186 = vector.broadcast %165 : vector<1x32xf32> to vector<16x32xf32>
    %187 = arith.addf %185, %186 : vector<16x32xf32>
    %188 = arith.addf %82, %187 : vector<16x32xf32>
    %c0_80 = arith.constant 0 : index
    %c0_81 = arith.constant 0 : index
    %189 = vector.load %arg15[%c0_80, %c0_81] : memref<16x32xf32, #tpu.memory_space<vmem>>, vector<16x32xf32>
    tpu.vector_store %arg15[%c0_80, %c0_81], %188 {strides = array<i32>} : memref<16x32xf32, #tpu.memory_space<vmem>>, vector<16x32xf32>,
    return
  }
  func.func @transform_0(%arg0: i32) -> (i32, i32) {
    %c0_i32 = arith.constant 0 : i32
    %c0_i32_0 = arith.constant 0 : i32
    %c0_i32_1 = arith.constant 0 : i32
    return %c0_i32, %c0_i32_0 : i32, i32
  }
  func.func @transform_1(%arg0: i32) -> (i32, i32) {
    %c0_i32 = arith.constant 0 : i32
    %c0_i32_0 = arith.constant 0 : i32
    return %arg0, %c0_i32 : i32, i32
  }
  func.func @transform_2(%arg0: i32) -> (i32, i32) {
    %c0_i32 = arith.constant 0 : i32
    %c0_i32_0 = arith.constant 0 : i32
    %c0_i32_1 = arith.constant 0 : i32
    return %c0_i32, %c0_i32_0 : i32, i32
  }
  func.func @transform_3(%arg0: i32) -> (i32, i32) {
    %c0_i32 = arith.constant 0 : i32
    %c0_i32_0 = arith.constant 0 : i32
    %c0_i32_1 = arith.constant 0 : i32
    return %c0_i32, %c0_i32_0 : i32, i32
  }
  func.func @transform_4(%arg0: i32) -> (i32, i32) {
    %c0_i32 = arith.constant 0 : i32
    %c0_i32_0 = arith.constant 0 : i32
    %c0_i32_1 = arith.constant 0 : i32
    return %c0_i32, %c0_i32_0 : i32, i32
  }
  func.func @transform_5(%arg0: i32) -> (i32, i32) {
    %c0_i32 = arith.constant 0 : i32
    %c0_i32_0 = arith.constant 0 : i32
    %c0_i32_1 = arith.constant 0 : i32
    return %c0_i32, %c0_i32_0 : i32, i32
  }
  func.func @transform_6(%arg0: i32) -> (i32, i32) {
    %c0_i32 = arith.constant 0 : i32
    %c0_i32_0 = arith.constant 0 : i32
    %c0_i32_1 = arith.constant 0 : i32
    return %c0_i32, %c0_i32_0 : i32, i32
  }
  func.func @transform_7(%arg0: i32) -> (i32, i32) {
    %c0_i32 = arith.constant 0 : i32
    %c0_i32_0 = arith.constant 0 : i32
    %c0_i32_1 = arith.constant 0 : i32
    return %c0_i32, %c0_i32_0 : i32, i32
  }
  func.func @transform_8(%arg0: i32) -> (i32, i32) {
    %c0_i32 = arith.constant 0 : i32
    %c0_i32_0 = arith.constant 0 : i32
    %c0_i32_1 = arith.constant 0 : i32
    return %c0_i32, %c0_i32_0 : i32, i32
  }
  func.func @transform_9(%arg0: i32) -> (i32, i32) {
    %c0_i32 = arith.constant 0 : i32
    %c0_i32_0 = arith.constant 0 : i32
    %c0_i32_1 = arith.constant 0 : i32
    return %c0_i32, %c0_i32_0 : i32, i32
  }
  func.func @transform_10(%arg0: i32) -> (i32, i32, i32) {
    %c0_i32 = arith.constant 0 : i32
    %c0_i32_0 = arith.constant 0 : i32
    %c0_i32_1 = arith.constant 0 : i32
    %c0_i32_2 = arith.constant 0 : i32
    return %c0_i32, %c0_i32_0, %c0_i32_1 : i32, i32, i32
  }
  func.func @transform_11(%arg0: i32) -> (i32, i32) {
    %c0_i32 = arith.constant 0 : i32
    %c0_i32_0 = arith.constant 0 : i32
    %c0_i32_1 = arith.constant 0 : i32
    return %c0_i32, %c0_i32_0 : i32, i32
  }
  func.func @transform_12(%arg0: i32) -> (i32, i32) {
    %c0_i32 = arith.constant 0 : i32
    %c0_i32_0 = arith.constant 0 : i32
    %c0_i32_1 = arith.constant 0 : i32
    return %c0_i32, %c0_i32_0 : i32, i32
  }
  func.func @transform_13(%arg0: i32) -> (i32, i32) {
    %c0_i32 = arith.constant 0 : i32
    %c0_i32_0 = arith.constant 0 : i32
    %c0_i32_1 = arith.constant 0 : i32
    return %c0_i32, %c0_i32_0 : i32, i32
  }
  func.func @transform_14(%arg0: i32) -> (i32, i32) {
    %c0_i32 = arith.constant 0 : i32
    %c0_i32_0 = arith.constant 0 : i32
    return %arg0, %c0_i32 : i32, i32
  }
}

</mosaic_0001>

<llo_original>
// kernel: fft_block_pallas.1
$region0: #{fft_block_pallas.1}
  #allocation0 [shape = 'u32[]', space=smem, size = 0x4, offset = 0x4, fixed_abs, tag = 'smem constant byte address 0x4 - core index']
  #allocation1 [shape = 'u32[72,128]{1,0:T(1,128)}', space=vmem, size = 0x9000, scoped, tag = 'internal scratch']
  #allocation2 [shape = 'bf16[16,32]{1,0:T(8,128)(2,1)}', space=vmem, size = 0x1000, scoped, tag = 'scratch operand']
  %s0 = inlined_call_operand.vmem [shape: f32[16,16], index: 0, kind: input, shape index: {}]
  %s1 = inlined_call_operand.vmem [shape: f32[32,32], index: 1, kind: input, shape index: {}]
  %s2 = inlined_call_operand.vmem [shape: bf16[32,96], index: 2, kind: input, shape index: {}]
  %s3 = inlined_call_operand.vmem [shape: f32[1,96], index: 3, kind: input, shape index: {}]
  %s4 = inlined_call_operand.vmem [shape: bf16[32,32], index: 4, kind: input, shape index: {}]
  %s5 = inlined_call_operand.vmem [shape: f32[1,32], index: 5, kind: input, shape index: {}]
  %s6 = inlined_call_operand.vmem [shape: f32[1,32], index: 6, kind: input, shape index: {}]
  %s7 = inlined_call_operand.vmem [shape: f32[1,32], index: 7, kind: input, shape index: {}]
  %s8 = inlined_call_operand.vmem [shape: bf16[96,64], index: 8, kind: input, shape index: {}]
  %s9 = inlined_call_operand.vmem [shape: f32[1,64], index: 9, kind: input, shape index: {}]
  %s10 = inlined_call_operand.vmem [shape: bf16[3,64,32], index: 10, kind: input, shape index: {}]
  %s11 = inlined_call_operand.vmem [shape: f32[1,32], index: 11, kind: input, shape index: {}]
  %s12 = inlined_call_operand.vmem [shape: f32[1,32], index: 12, kind: input, shape index: {}]
  %s13 = inlined_call_operand.vmem [shape: f32[1,32], index: 13, kind: input, shape index: {}]
  %s14 = inlined_call_operand.hbm [shape: f32[32,32], index: 14, kind: output, shape index: {}]
  %s15 = sld [smem:[#allocation0]]
  $region89: #{fft_block_pallas.1} parent=0
    _
  %s17 = ssub.s32 1, %s15
  %s18 = scalar_select 0, %s17, %s15
  $region1: #{fft_block_pallas.1} parent=0
    #allocation3 [shape = 'u8[16384]{0}', space=vmem, size = 0x4000, scoped, tag = 'output window, operand 0']
    #allocation4 [shape = 's32[2]{0}', space=sflag, size = 0x8, scoped, tag = 'scoped memory for fft_block_pallas.1']
    %19 = vsyncpa [#allocation4], 0
    %s20 = scalar_lea.sflag [#allocation4], 1
    %21 = vsyncpa %s20, 0
    loop: start=0, step=1, limit=4
    $region2: #{fft_block_pallas.1} parent=1 // loop_pre_header
      _
    $region3: #{fft_block_pallas.1} parent=1 // loop_header
      %s23 = sphi 0, %s27
      %p24 = scmp.ge.s32.totalorder %s23, 4
      %s31 = sphi 0, %s31
      %s33 = sphi 0, %s31
      %s34 = sphi 0, %s33
      %s48 = sphi 0, %s34
      %s54 = sphi 0, %s56
      %s57 = sphi 0, %s54
      %s58 = sphi 0, %s57
      %s74 = sphi 0, %s58
      %s78 = sphi 0, %s78
      %s80 = sphi 0, %s78
      %s81 = sphi 0, %s80
      %s95 = sphi 0, %s81
      %s99 = sphi 0, %s99
      %s101 = sphi 0, %s99
      %s102 = sphi 0, %s101
      %s116 = sphi 0, %s102
      %s120 = sphi 0, %s120
      %s122 = sphi 0, %s120
      %s123 = sphi 0, %s122
      %s137 = sphi 0, %s123
      %s141 = sphi 0, %s141
      %s143 = sphi 0, %s141
      %s144 = sphi 0, %s143
      %s158 = sphi 0, %s144
      %s162 = sphi 0, %s162
      %s164 = sphi 0, %s162
      %s165 = sphi 0, %s164
      %s179 = sphi 0, %s165
      %s183 = sphi 0, %s183
      %s185 = sphi 0, %s183
      %s186 = sphi 0, %s185
      %s200 = sphi 0, %s186
      %s204 = sphi 0, %s204
      %s206 = sphi 0, %s204
      %s207 = sphi 0, %s206
      %s221 = sphi 0, %s207
      %s225 = sphi 0, %s225
      %s227 = sphi 0, %s225
      %s228 = sphi 0, %s227
      %s242 = sphi 0, %s228
      %s246 = sphi 0, %s246
      %s248 = sphi 0, %s246
      %s249 = sphi 0, %s248
      %s263 = sphi 0, %s249
      %s267 = sphi 0, %s267
      %s269 = sphi 0, %s267
      %s270 = sphi 0, %s269
      %s284 = sphi 0, %s270
      %s288 = sphi 0, %s288
      %s290 = sphi 0, %s288
      %s291 = sphi 0, %s290
      %s305 = sphi 0, %s291
      %s309 = sphi 0, %s309
      %s311 = sphi 0, %s309
      %s312 = sphi 0, %s311
      %s326 = sphi 0, %s312
      %s332 = sphi 0, %s334
      %s335 = sphi 0, %s332
      %s336 = sphi 0, %s335
      %s352 = sphi 0, %s336
    $region4: #{fft_block_pallas.1} parent=1 // loop_header_branch
      %26 = sbr.rel (%p24) target = $region8
    $region5: #{fft_block_pallas.1} parent=1 // loop_body
      %s28 = ssub.s32 %s23, 1
      %s29 = ssub.s32 %s23, 2
      %s30 = sadd.s32 %s23, 1
      %s32 = sadd.s32 %s31, 1
      %p35 = scmp.eq.s32.totalorder %s23, 1
      %p36 = scmp.ne.s32.totalorder %s31, %s33
      %p37 = scmp.eq.s32.totalorder %s23, 0
      %p38 = por %p36, %p37
      %p39 = scmp.ne.s32.totalorder %s31, %s33
      %p40 = scmp.eq.s32.totalorder %s28, 1
      %p41 = por %p39, %p40
      %p42 = scmp.ne.s32.totalorder %s33, %s34
      %p43 = scmp.eq.s32.totalorder %s28, 0
      %p44 = por %p42, %p43
      %p45 = scmp.ne.s32.totalorder %s33, %s34
      %p46 = scmp.eq.s32.totalorder %s29, 1
      %p47 = por %p45, %p46
      %p49 = scmp.ne.s32.totalorder %s34, %s48
      %p50 = scmp.eq.s32.totalorder %s29, 0
      %p51 = por %p49, %p50
      %s52 = ssub.s32 %s23, %s30
      %p53 = scmp.eq.s32.totalorder %s52, 0
      %s55 = sadd.s32 %s54, 1
      %s56 = scalar_select %p53, %s54, %s55
      %p59 = pneg %p53
      %p60 = scmp.eq.s32.totalorder %s23, 1
      %p61 = por %p59, %p60
      %p62 = scmp.ne.s32.totalorder %s54, %s57
      %p63 = scmp.eq.s32.totalorder %s23, 0
      %p64 = por %p62, %p63
      %p65 = scmp.ne.s32.totalorder %s54, %s57
      %p66 = scmp.eq.s32.totalorder %s28, 1
      %p67 = por %p65, %p66
      %p68 = scmp.ne.s32.totalorder %s57, %s58
      %p69 = scmp.eq.s32.totalorder %s28, 0
      %p70 = por %p68, %p69
      %p71 = scmp.ne.s32.totalorder %s57, %s58
      %p72 = scmp.eq.s32.totalorder %s29, 1
      %p73 = por %p71, %p72
      %p75 = scmp.ne.s32.totalorder %s58, %s74
      %p76 = scmp.eq.s32.totalorder %s29, 0
      %p77 = por %p75, %p76
      %s79 = sadd.s32 %s78, 1
      %p82 = scmp.eq.s32.totalorder %s23, 1
      %p83 = scmp.ne.s32.totalorder %s78, %s80
      %p84 = scmp.eq.s32.totalorder %s23, 0
      %p85 = por %p83, %p84
      %p86 = scmp.ne.s32.totalorder %s78, %s80
      %p87 = scmp.eq.s32.totalorder %s28, 1
      %p88 = por %p86, %p87
      %p89 = scmp.ne.s32.totalorder %s80, %s81
      %p90 = scmp.eq.s32.totalorder %s28, 0
      %p91 = por %p89, %p90
      %p92 = scmp.ne.s32.totalorder %s80, %s81
      %p93 = scmp.eq.s32.totalorder %s29, 1
      %p94 = por %p92, %p93
      %p96 = scmp.ne.s32.totalorder %s81, %s95
      %p97 = scmp.eq.s32.totalorder %s29, 0
      %p98 = por %p96, %p97
      %s100 = sadd.s32 %s99, 1
      %p103 = scmp.eq.s32.totalorder %s23, 1
      %p104 = scmp.ne.s32.totalorder %s99, %s101
      %p105 = scmp.eq.s32.totalorder %s23, 0
      %p106 = por %p104, %p105
      %p107 = scmp.ne.s32.totalorder %s99, %s101
      %p108 = scmp.eq.s32.totalorder %s28, 1
      %p109 = por %p107, %p108
      %p110 = scmp.ne.s32.totalorder %s101, %s102
      %p111 = scmp.eq.s32.totalorder %s28, 0
      %p112 = por %p110, %p111
      %p113 = scmp.ne.s32.totalorder %s101, %s102
      %p114 = scmp.eq.s32.totalorder %s29, 1
      %p115 = por %p113, %p114
      %p117 = scmp.ne.s32.totalorder %s102, %s116
      %p118 = scmp.eq.s32.totalorder %s29, 0
      %p119 = por %p117, %p118
      %s121 = sadd.s32 %s120, 1
      %p124 = scmp.eq.s32.totalorder %s23, 1
      %p125 = scmp.ne.s32.totalorder %s120, %s122
      %p126 = scmp.eq.s32.totalorder %s23, 0
      %p127 = por %p125, %p126
      %p128 = scmp.ne.s32.totalorder %s120, %s122
      %p129 = scmp.eq.s32.totalorder %s28, 1
      %p130 = por %p128, %p129
      %p131 = scmp.ne.s32.totalorder %s122, %s123
      %p132 = scmp.eq.s32.totalorder %s28, 0
      %p133 = por %p131, %p132
      %p134 = scmp.ne.s32.totalorder %s122, %s123
      %p135 = scmp.eq.s32.totalorder %s29, 1
      %p136 = por %p134, %p135
      %p138 = scmp.ne.s32.totalorder %s123, %s137
      %p139 = scmp.eq.s32.totalorder %s29, 0
      %p140 = por %p138, %p139
      %s142 = sadd.s32 %s141, 1
      %p145 = scmp.eq.s32.totalorder %s23, 1
      %p146 = scmp.ne.s32.totalorder %s141, %s143
      %p147 = scmp.eq.s32.totalorder %s23, 0
      %p148 = por %p146, %p147
      %p149 = scmp.ne.s32.totalorder %s141, %s143
      %p150 = scmp.eq.s32.totalorder %s28, 1
      %p151 = por %p149, %p150
      %p152 = scmp.ne.s32.totalorder %s143, %s144
      %p153 = scmp.eq.s32.totalorder %s28, 0
      %p154 = por %p152, %p153
      %p155 = scmp.ne.s32.totalorder %s143, %s144
      %p156 = scmp.eq.s32.totalorder %s29, 1
      %p157 = por %p155, %p156
      %p159 = scmp.ne.s32.totalorder %s144, %s158
      %p160 = scmp.eq.s32.totalorder %s29, 0
      %p161 = por %p159, %p160
      %s163 = sadd.s32 %s162, 1
      %p166 = scmp.eq.s32.totalorder %s23, 1
      %p167 = scmp.ne.s32.totalorder %s162, %s164
      %p168 = scmp.eq.s32.totalorder %s23, 0
      %p169 = por %p167, %p168
      %p170 = scmp.ne.s32.totalorder %s162, %s164
      %p171 = scmp.eq.s32.totalorder %s28, 1
      %p172 = por %p170, %p171
      %p173 = scmp.ne.s32.totalorder %s164, %s165
      %p174 = scmp.eq.s32.totalorder %s28, 0
      %p175 = por %p173, %p174
      %p176 = scmp.ne.s32.totalorder %s164, %s165
      %p177 = scmp.eq.s32.totalorder %s29, 1
      %p178 = por %p176, %p177
      %p180 = scmp.ne.s32.totalorder %s165, %s179
      %p181 = scmp.eq.s32.totalorder %s29, 0
      %p182 = por %p180, %p181
      %s184 = sadd.s32 %s183, 1
      %p187 = scmp.eq.s32.totalorder %s23, 1
      %p188 = scmp.ne.s32.totalorder %s183, %s185
      %p189 = scmp.eq.s32.totalorder %s23, 0
      %p190 = por %p188, %p189
      %p191 = scmp.ne.s32.totalorder %s183, %s185
      %p192 = scmp.eq.s32.totalorder %s28, 1
      %p193 = por %p191, %p192
      %p194 = scmp.ne.s32.totalorder %s185, %s186
      %p195 = scmp.eq.s32.totalorder %s28, 0
      %p196 = por %p194, %p195
      %p197 = scmp.ne.s32.totalorder %s185, %s186
      %p198 = scmp.eq.s32.totalorder %s29, 1
      %p199 = por %p197, %p198
      %p201 = scmp.ne.s32.totalorder %s186, %s200
      %p202 = scmp.eq.s32.totalorder %s29, 0
      %p203 = por %p201, %p202
      %s205 = sadd.s32 %s204, 1
      %p208 = scmp.eq.s32.totalorder %s23, 1
      %p209 = scmp.ne.s32.totalorder %s204, %s206
      %p210 = scmp.eq.s32.totalorder %s23, 0
      %p211 = por %p209, %p210
      %p212 = scmp.ne.s32.totalorder %s204, %s206
      %p213 = scmp.eq.s32.totalorder %s28, 1
      %p214 = por %p212, %p213
      %p215 = scmp.ne.s32.totalorder %s206, %s207
      %p216 = scmp.eq.s32.totalorder %s28, 0
      %p217 = por %p215, %p216
      %p218 = scmp.ne.s32.totalorder %s206, %s207
      %p219 = scmp.eq.s32.totalorder %s29, 1
      %p220 = por %p218, %p219
      %p222 = scmp.ne.s32.totalorder %s207, %s221
      %p223 = scmp.eq.s32.totalorder %s29, 0
      %p224 = por %p222, %p223
      %s226 = sadd.s32 %s225, 1
      %p229 = scmp.eq.s32.totalorder %s23, 1
      %p230 = scmp.ne.s32.totalorder %s225, %s227
      %p231 = scmp.eq.s32.totalorder %s23, 0
      %p232 = por %p230, %p231
      %p233 = scmp.ne.s32.totalorder %s225, %s227
      %p234 = scmp.eq.s32.totalorder %s28, 1
      %p235 = por %p233, %p234
      %p236 = scmp.ne.s32.totalorder %s227, %s228
      %p237 = scmp.eq.s32.totalorder %s28, 0
      %p238 = por %p236, %p237
      %p239 = scmp.ne.s32.totalorder %s227, %s228
      %p240 = scmp.eq.s32.totalorder %s29, 1
      %p241 = por %p239, %p240
      %p243 = scmp.ne.s32.totalorder %s228, %s242
      %p244 = scmp.eq.s32.totalorder %s29, 0
      %p245 = por %p243, %p244
      %s247 = sadd.s32 %s246, 1
      %p250 = scmp.eq.s32.totalorder %s23, 1
      %p251 = scmp.ne.s32.totalorder %s246, %s248
      %p252 = scmp.eq.s32.totalorder %s23, 0
      %p253 = por %p251, %p252
      %p254 = scmp.ne.s32.totalorder %s246, %s248
      %p255 = scmp.eq.s32.totalorder %s28, 1
      %p256 = por %p254, %p255
      %p257 = scmp.ne.s32.totalorder %s248, %s249
      %p258 = scmp.eq.s32.totalorder %s28, 0
      %p259 = por %p257, %p258
      %p260 = scmp.ne.s32.totalorder %s248, %s249
      %p261 = scmp.eq.s32.totalorder %s29, 1
      %p262 = por %p260, %p261
      %p264 = scmp.ne.s32.totalorder %s249, %s263
      %p265 = scmp.eq.s32.totalorder %s29, 0
      %p266 = por %p264, %p265
      %s268 = sadd.s32 %s267, 1
      %p271 = scmp.eq.s32.totalorder %s23, 1
      %p272 = scmp.ne.s32.totalorder %s267, %s269
      %p273 = scmp.eq.s32.totalorder %s23, 0
      %p274 = por %p272, %p273
      %p275 = scmp.ne.s32.totalorder %s267, %s269
      %p276 = scmp.eq.s32.totalorder %s28, 1
      %p277 = por %p275, %p276
      %p278 = scmp.ne.s32.totalorder %s269, %s270
      %p279 = scmp.eq.s32.totalorder %s28, 0
      %p280 = por %p278, %p279
      %p281 = scmp.ne.s32.totalorder %s269, %s270
      %p282 = scmp.eq.s32.totalorder %s29, 1
      %p283 = por %p281, %p282
      %p285 = scmp.ne.s32.totalorder %s270, %s284
      %p286 = scmp.eq.s32.totalorder %s29, 0
      %p287 = por %p285, %p286
      %s289 = sadd.s32 %s288, 1
      %p292 = scmp.eq.s32.totalorder %s23, 1
      %p293 = scmp.ne.s32.totalorder %s288, %s290
      %p294 = scmp.eq.s32.totalorder %s23, 0
      %p295 = por %p293, %p294
      %p296 = scmp.ne.s32.totalorder %s288, %s290
      %p297 = scmp.eq.s32.totalorder %s28, 1
      %p298 = por %p296, %p297
      %p299 = scmp.ne.s32.totalorder %s290, %s291
      %p300 = scmp.eq.s32.totalorder %s28, 0
      %p301 = por %p299, %p300
      %p302 = scmp.ne.s32.totalorder %s290, %s291
      %p303 = scmp.eq.s32.totalorder %s29, 1
      %p304 = por %p302, %p303
      %p306 = scmp.ne.s32.totalorder %s291, %s305
      %p307 = scmp.eq.s32.totalorder %s29, 0
      %p308 = por %p306, %p307
      %s310 = sadd.s32 %s309, 1
      %p313 = scmp.eq.s32.totalorder %s23, 1
      %p314 = scmp.ne.s32.totalorder %s309, %s311
      %p315 = scmp.eq.s32.totalorder %s23, 0
      %p316 = por %p314, %p315
      %p317 = scmp.ne.s32.totalorder %s309, %s311
      %p318 = scmp.eq.s32.totalorder %s28, 1
      %p319 = por %p317, %p318
      %p320 = scmp.ne.s32.totalorder %s311, %s312
      %p321 = scmp.eq.s32.totalorder %s28, 0
      %p322 = por %p320, %p321
      %p323 = scmp.ne.s32.totalorder %s311, %s312
      %p324 = scmp.eq.s32.totalorder %s29, 1
      %p325 = por %p323, %p324
      %p327 = scmp.ne.s32.totalorder %s312, %s326
      %p328 = scmp.eq.s32.totalorder %s29, 0
      %p329 = por %p327, %p328
      %s330 = ssub.s32 %s23, %s30
      %p331 = scmp.eq.s32.totalorder %s330, 0
      %s333 = sadd.s32 %s332, 1
      %s334 = scalar_select %p331, %s332, %s333
      %p337 = pneg %p331
      %p338 = scmp.eq.s32.totalorder %s23, 1
      %p339 = por %p337, %p338
      %p340 = scmp.ne.s32.totalorder %s332, %s335
      %p341 = scmp.eq.s32.totalorder %s23, 0
      %p342 = por %p340, %p341
      %p343 = scmp.ne.s32.totalorder %s332, %s335
      %p344 = scmp.eq.s32.totalorder %s28, 1
      %p345 = por %p343, %p344
      %p346 = scmp.ne.s32.totalorder %s335, %s336
      %p347 = scmp.eq.s32.totalorder %s28, 0
      %p348 = por %p346, %p347
      %p349 = scmp.ne.s32.totalorder %s335, %s336
      %p350 = scmp.eq.s32.totalorder %s29, 1
      %p351 = por %p349, %p350
      %p353 = scmp.ne.s32.totalorder %s336, %s352
      %p354 = scmp.eq.s32.totalorder %s29, 0
      %p355 = por %p353, %p354
      %p356 = scmp.le.s32.totalorder 1, %s23
      %p357 = scmp.lt.s32.totalorder %s23, 3
      %p358 = pnand %p356, %p357
      %p359 = pneg %p358
      // Predicated region
      $region9: #{fft_block_pallas.1} parent=5 // pred_check
        _
      $region10: #{fft_block_pallas.1} parent=5 // pred_check_branch
        %361 = sbr.rel (%p358) target = $region12
      $region11: #{fft_block_pallas.1} parent=5 // pred_region
        %s362 = ssub.s32 %s23, 1
        // Predicated region
        $region13: #{fft_block_pallas.1} parent=11 // pred_check
          %p363 = pneg %p44
        $region14: #{fft_block_pallas.1} parent=11 // pred_check_branch
          %365 = sbr.rel (%p363) target = $region16
        $region15: #{fft_block_pallas.1} parent=11 // pred_region
          _
        $region16: #{fft_block_pallas.1} parent=11 // pred_fallthru
          _
        // Predicated region
        $region17: #{fft_block_pallas.1} parent=11 // pred_check
          %p366 = pneg %p91
        $region18: #{fft_block_pallas.1} parent=11 // pred_check_branch
          %368 = sbr.rel (%p366) target = $region20
        $region19: #{fft_block_pallas.1} parent=11 // pred_region
          _
        $region20: #{fft_block_pallas.1} parent=11 // pred_fallthru
          _
        // Predicated region
        $region21: #{fft_block_pallas.1} parent=11 // pred_check
          %p369 = pneg %p112
        $region22: #{fft_block_pallas.1} parent=11 // pred_check_branch
          %371 = sbr.rel (%p369) target = $region24
        $region23: #{fft_block_pallas.1} parent=11 // pred_region
          _
        $region24: #{fft_block_pallas.1} parent=11 // pred_fallthru
          _
        // Predicated region
        $region25: #{fft_block_pallas.1} parent=11 // pred_check
          %p372 = pneg %p133
        $region26: #{fft_block_pallas.1} parent=11 // pred_check_branch
          %374 = sbr.rel (%p372) target = $region28
        $region27: #{fft_block_pallas.1} parent=11 // pred_region
          _
        $region28: #{fft_block_pallas.1} parent=11 // pred_fallthru
          _
        // Predicated region
        $region29: #{fft_block_pallas.1} parent=11 // pred_check
          %p375 = pneg %p154
        $region30: #{fft_block_pallas.1} parent=11 // pred_check_branch
          %377 = sbr.rel (%p375) target = $region32
        $region31: #{fft_block_pallas.1} parent=11 // pred_region
          _
        $region32: #{fft_block_pallas.1} parent=11 // pred_fallthru
          _
        // Predicated region
        $region33: #{fft_block_pallas.1} parent=11 // pred_check
          %p378 = pneg %p175
        $region34: #{fft_block_pallas.1} parent=11 // pred_check_branch
          %380 = sbr.rel (%p378) target = $region36
        $region35: #{fft_block_pallas.1} parent=11 // pred_region
          _
        $region36: #{fft_block_pallas.1} parent=11 // pred_fallthru
          _
        // Predicated region
        $region37: #{fft_block_pallas.1} parent=11 // pred_check
          %p381 = pneg %p196
        $region38: #{fft_block_pallas.1} parent=11 // pred_check_branch
          %383 = sbr.rel (%p381) target = $region40
        $region39: #{fft_block_pallas.1} parent=11 // pred_region
          _
        $region40: #{fft_block_pallas.1} parent=11 // pred_fallthru
          _
        // Predicated region
        $region41: #{fft_block_pallas.1} parent=11 // pred_check
          %p384 = pneg %p217
        $region42: #{fft_block_pallas.1} parent=11 // pred_check_branch
          %386 = sbr.rel (%p384) target = $region44
        $region43: #{fft_block_pallas.1} parent=11 // pred_region
          _
        $region44: #{fft_block_pallas.1} parent=11 // pred_fallthru
          _
        // Predicated region
        $region45: #{fft_block_pallas.1} parent=11 // pred_check
          %p387 = pneg %p238
        $region46: #{fft_block_pallas.1} parent=11 // pred_check_branch
          %389 = sbr.rel (%p387) target = $region48
        $region47: #{fft_block_pallas.1} parent=11 // pred_region
          _
        $region48: #{fft_block_pallas.1} parent=11 // pred_fallthru
          _
        // Predicated region
        $region49: #{fft_block_pallas.1} parent=11 // pred_check
          %p390 = pneg %p259
        $region50: #{fft_block_pallas.1} parent=11 // pred_check_branch
          %392 = sbr.rel (%p390) target = $region52
        $region51: #{fft_block_pallas.1} parent=11 // pred_region
          _
        $region52: #{fft_block_pallas.1} parent=11 // pred_fallthru
          _
        // Predicated region
        $region53: #{fft_block_pallas.1} parent=11 // pred_check
          %p393 = pneg %p280
        $region54: #{fft_block_pallas.1} parent=11 // pred_check_branch
          %395 = sbr.rel (%p393) target = $region56
        $region55: #{fft_block_pallas.1} parent=11 // pred_region
          _
        $region56: #{fft_block_pallas.1} parent=11 // pred_fallthru
          _
        // Predicated region
        $region57: #{fft_block_pallas.1} parent=11 // pred_check
          %p396 = pneg %p301
        $region58: #{fft_block_pallas.1} parent=11 // pred_check_branch
          %398 = sbr.rel (%p396) target = $region60
        $region59: #{fft_block_pallas.1} parent=11 // pred_region
          _
        $region60: #{fft_block_pallas.1} parent=11 // pred_fallthru
          _
        // Predicated region
        $region61: #{fft_block_pallas.1} parent=11 // pred_check
          %p399 = pneg %p322
        $region62: #{fft_block_pallas.1} parent=11 // pred_check_branch
          %401 = sbr.rel (%p399) target = $region64
        $region63: #{fft_block_pallas.1} parent=11 // pred_region
          _
        $region64: #{fft_block_pallas.1} parent=11 // pred_fallthru
          _
      $region12: #{fft_block_pallas.1} parent=5 // pred_fallthru
        _
      %p402 = scmp.lt.s32.totalorder %s23, 2
      // Predicated region
      $region65: #{fft_block_pallas.1} parent=5 // pred_check
        %p403 = pneg %p402
      $region66: #{fft_block_pallas.1} parent=5 // pred_check_branch
        %405 = sbr.rel (%p403) target = $region68
      $region67: #{fft_block_pallas.1} parent=5 // pred_region
        // Predicated region
        $region69: #{fft_block_pallas.1} parent=67 // pred_check
          %p406 = pneg %p64
        $region70: #{fft_block_pallas.1} parent=67 // pred_check_branch
          %408 = sbr.rel (%p406) target = $region72
        $region71: #{fft_block_pallas.1} parent=67 // pred_region
          %s409 = smul.u32 2, %s23
          %p410 = scmp.lt.s32.totalorder %s409, 3
          %s411 = scalar_select %p410, %s409, 3
          %s412 = smul.addr %s411, 8
          %s413 = scalar_lea.vmem %s1, %s412
          %s414 = smul.u32 2, %s23
        $region72: #{fft_block_pallas.1} parent=67 // pred_fallthru
          _
      $region68: #{fft_block_pallas.1} parent=5 // pred_fallthru
        _
      %p415 = scmp.le.s32.totalorder 1, %s23
      %p416 = scmp.lt.s32.totalorder %s23, 3
      %p417 = pnand %p415, %p416
      %p418 = pneg %p417
      // Predicated region
      $region73: #{fft_block_pallas.1} parent=5 // pred_check
        _
      $region74: #{fft_block_pallas.1} parent=5 // pred_check_branch
        %420 = sbr.rel (%p417) target = $region76
      $region75: #{fft_block_pallas.1} parent=5 // pred_region
        %s421 = ssub.s32 %s23, 1
        %p422 = pneg %p44
        %p423 = pneg %p41
        %s424 = smul.u32 2, %s28
        %p425 = scmp.lt.s32.totalorder %s424, 3
        %s426 = scalar_select %p425, %s424, 3
        %s427 = smul.addr %s426, 8
        %s428 = scalar_lea.vmem %s1, %s427
        %p429 = pneg %p70
        %p430 = pneg %p67
        %p431 = pneg %p91
        %p432 = pneg %p88
        %p433 = pneg %p112
        %p434 = pneg %p109
        %p435 = pneg %p133
        %p436 = pneg %p130
        %p437 = pneg %p154
        %p438 = pneg %p151
        %p439 = pneg %p175
        %p440 = pneg %p172
        %p441 = pneg %p196
        %p442 = pneg %p193
        %p443 = pneg %p217
        %p444 = pneg %p214
        %p445 = pneg %p238
        %p446 = pneg %p235
        %p447 = pneg %p259
        %p448 = pneg %p256
        %p449 = pneg %p280
        %p450 = pneg %p277
        %p451 = pneg %p301
        %p452 = pneg %p298
        %p453 = pneg %p322
        %p454 = pneg %p319
        %p455 = pneg %p348
        %p456 = pneg %p345
        %s457 = sand.u32 %s335, 1
        %s458 = scalar_lea.sflag [#allocation4], %s457
        %s459 = sand.u32 %s335, 1
        %s460 = smul.addr %s459, 16
        %s461 = scalar_lea.vmem [#allocation3], %s460
        %s462 = smul.u32 2, %s28
        %p463 = scmp.lt.s32.totalorder %s462, 3
        %s464 = scalar_select %p463, %s462, 3
        %s465 = smul.addr %s464, 8
        %s466 = scalar_lea.vmem %s1, %s465
        %s467 = smul.u32 2, %s28
        %s468 = smul.u32 2, %s28
        %v470 = vld [vmem:[%s466] sm:$0xff]
        %v471 = vld [vmem:[%s466 + $0x8] sm:$0xff]
        %v472 = vld [vmem:[%s0] sm:$0xff]
        %v473 = vld [vmem:[%s0 + $0x8] sm:$0xff]
        %v474 = vpack.c.bf16 %v471, %v470
        %v475 = vld [vmem:[%s2] sm:$0xf]
        %v476 = vld [vmem:[%s2 + $0x4] sm:$0xf]
        %v477 = vld [vmem:[%s2 + $0x8] sm:$0xf]
        %v478 = vld [vmem:[%s2 + $0xc] sm:$0xf]
        %v479 = vld [vmem:[%s3] sm:$0x1]
        %v481 = vperm.slane %v479, 0
        %v487 = vunpack.c.l.b16 %v475
        %v488 = vunpack.c.l.b16 %v476
        %v489 = vunpack.c.l.b16 %v477
        %v490 = vunpack.c.l.b16 %v478
        %v491 = vpack.c.b16 %v488, %v487
        %v492 = vpack.c.b16 %v490, %v489
        %vm495 = vcmask 261120
        %v497 = vsel %vm495, %v474, 0
        %499 = vmatpush.bf16.msra.mxu0 0
        %500 = vmatpush.bf16.msra.mxu0 0
        %501 = vmatpush.bf16.msra.mxu0 0
        %502 = vmatpush.bf16.msra.mxu0 0
        %503 = vmatpush.bf16.msra.mxu0 0
        %504 = vmatpush.bf16.msra.mxu0 0
        %505 = vmatpush.bf16.msra.mxu0 %v492
        %506 = vmatpush.bf16.msra.mxu0 %v491
        %507 = vmatmul.bf16.gmra.mxu0 %v497
        %v508 = vpop.f32.mrf.mxu0
        %v509 = vadd.f32 %v481, %v508
        %v510 = vpop.f32.mrf.mxu0
        %v511 = vadd.f32 %v481, %v510
        %512 = vdwg.mxu0
        %v513 = vpack.c.bf16 %v511, %v509
        %515 = vrot.lane.b32.xlu0 %v513, 96
        %v516 = vpop.permute.xlu0 %515
        %vm517 = vcmask 130048
        %v519 = vsel %vm517, %v513, 0
        %v522 = vsel %vm517, %v516, 0
        %524 = vmatpush.bf16.xpose.msra.mxu0 0
        %525 = vmatpush.bf16.xpose.msra.mxu0 0
        %526 = vmatpush.bf16.xpose.msra.mxu0 0
        %527 = vmatpush.bf16.xpose.msra.mxu0 0
        %528 = vmatpush.bf16.xpose.msra.mxu0 0
        %529 = vmatpush.bf16.xpose.msra.mxu0 0
        %530 = vmatpush.bf16.xpose.msra.mxu0 0
        %531 = vmatpush.bf16.xpose.msra.mxu0 %v522
        %532 = vmatmul.bf16.gmra.mxu0 %v519
        %v533 = vpop.f32.mrf.mxu0
        %v534 = vadd.f32 %v472, %v533
        %v535 = vpop.f32.mrf.mxu0
        %v536 = vadd.f32 %v473, %v535
        %537 = vdwg.mxu0
        %v538 = vsel %vm517, %v534, -inf
        %539 = vmax.xlane.f32.xlu0 %v538
        %v540 = vpop.xlane.xlu0 %539
        %v541 = vsel %vm517, %v536, -inf
        %542 = vmax.xlane.f32.xlu0 %v541
        %v543 = vpop.xlane.xlu0 %542
        %v544 = vsub.f32 %v534, %v540
        %v545 = vsub.f32 %v536, %v543
        %v546 = vmul.f32 %v544, 1.442695
        %v547 = vpow.pop %v546
        %v548 = vmul.f32 %v545, 1.442695
        %v549 = vpow.pop %v548
        %v550 = vsel %vm517, %v547, 0.0
        %551 = vadd.xlane.f32.xlu0 %v550
        %v552 = vpop.xlane.xlu0 %551
        %v553 = vsel %vm517, %v549, 0.0
        %554 = vadd.xlane.f32.xlu0 %v553
        %v555 = vpop.xlane.xlu0 %554
        %v556 = vpack.c.bf16 %v549, %v547
        %557 = vrot.lane.b32.xlu0 %v513, 64
        %v558 = vpop.permute.xlu0 %557
        %v561 = vsel %vm517, %v556, 0
        %563 = vmatpush.bf16.msra.mxu0 0
        %564 = vmatpush.bf16.msra.mxu0 0
        %565 = vmatpush.bf16.msra.mxu0 0
        %566 = vmatpush.bf16.msra.mxu0 0
        %567 = vmatpush.bf16.msra.mxu0 0
        %568 = vmatpush.bf16.msra.mxu0 0
        %569 = vmatpush.bf16.msra.mxu0 0
        %570 = vmatpush.bf16.msra.mxu0 %v558
        %571 = vmatmul.bf16.gmra.mxu0 %v561
        %v572 = vpop.f32.mrf.mxu0
        %v573 = vadd.f32 0.0, %v572
        %v574 = vpop.f32.mrf.mxu0
        %v575 = vadd.f32 0.0, %v574
        %576 = vdwg.mxu0
        %v577 = vrcp.pop %v552
        %v578 = vmul.f32 %v552, %v577
        %v579 = vsub.f32 1.0, %v578
        %v580 = vmul.f32 %v577, %v579
        %v581 = vadd.f32 %v577, %v580
        %vm582 = vweird.f32 %v552
        %vm583 = vweird.f32 %v577
        %vm584 = vmor %vm582, %vm583
        %v585 = vsel %vm584, %v577, %v581
        %v586 = vand.u32 2147483647, %v552
        %vm587 = vcmp.eq.f32.partialorder %v586, 8.507059e+37
        %v588 = vand.u32 %v552, 2147483648
        %v589 = vor.u32 1.1754944e-38, %v588
        %v590 = vsel %vm587, %v589, %v585
        %v591 = vrcp.pop %v555
        %v592 = vmul.f32 %v555, %v591
        %v593 = vsub.f32 1.0, %v592
        %v594 = vmul.f32 %v591, %v593
        %v595 = vadd.f32 %v591, %v594
        %vm596 = vweird.f32 %v555
        %vm597 = vweird.f32 %v591
        %vm598 = vmor %vm596, %vm597
        %v599 = vsel %vm598, %v591, %v595
        %v600 = vand.u32 2147483647, %v555
        %vm601 = vcmp.eq.f32.partialorder %v600, 8.507059e+37
        %v602 = vand.u32 %v555, 2147483648
        %v603 = vor.u32 1.1754944e-38, %v602
        %v604 = vsel %vm601, %v603, %v599
        %v605 = vmul.f32 %v573, %v590
        %v606 = vmul.f32 %v575, %v604
        %v607 = vpack.c.bf16 %v605, %v605
        %v608 = vpack.c.bf16 %v606, %v606
        %vm609 = vcmask 125952
        %610 = vst.msk [vmem:[#allocation2] sm:$0xf] %vm609, %v607
        %611 = vst.msk [vmem:[#allocation2 + $0x4] sm:$0xf] %vm609, %v608
        %612 = vrot.lane.b32.xlu0 %v513, 112
        %v613 = vpop.permute.xlu0 %612
        %614 = vrot.lane.b32.xlu0 %v513, 80
        %v615 = vpop.permute.xlu0 %614
        %v617 = vsel %vm517, %v613, 0
        %v620 = vsel %vm517, %v615, 0
        %622 = vmatpush.bf16.xpose.msra.mxu0 0
        %623 = vmatpush.bf16.xpose.msra.mxu0 0
        %624 = vmatpush.bf16.xpose.msra.mxu0 0
        %625 = vmatpush.bf16.xpose.msra.mxu0 0
        %626 = vmatpush.bf16.xpose.msra.mxu0 0
        %627 = vmatpush.bf16.xpose.msra.mxu0 0
        %628 = vmatpush.bf16.xpose.msra.mxu0 0
        %629 = vmatpush.bf16.xpose.msra.mxu0 %v620
        %630 = vmatmul.bf16.gmra.mxu0 %v617
        %v631 = vpop.f32.mrf.mxu0
        %v632 = vadd.f32 %v472, %v631
        %v633 = vpop.f32.mrf.mxu0
        %v634 = vadd.f32 %v473, %v633
        %635 = vdwg.mxu0
        %v636 = vsel %vm517, %v632, -inf
        %637 = vmax.xlane.f32.xlu0 %v636
        %v638 = vpop.xlane.xlu0 %637
        %v639 = vsel %vm517, %v634, -inf
        %640 = vmax.xlane.f32.xlu0 %v639
        %v641 = vpop.xlane.xlu0 %640
        %v642 = vsub.f32 %v632, %v638
        %v643 = vsub.f32 %v634, %v641
        %v644 = vmul.f32 %v642, 1.442695
        %v645 = vpow.pop %v644
        %v646 = vmul.f32 %v643, 1.442695
        %v647 = vpow.pop %v646
        %v648 = vsel %vm517, %v645, 0.0
        %649 = vadd.xlane.f32.xlu0 %v648
        %v650 = vpop.xlane.xlu0 %649
        %v651 = vsel %vm517, %v647, 0.0
        %652 = vadd.xlane.f32.xlu0 %v651
        %v653 = vpop.xlane.xlu0 %652
        %v654 = vpack.c.bf16 %v647, %v645
        %655 = vrot.lane.b32.xlu0 %v513, 48
        %v656 = vpop.permute.xlu0 %655
        %v659 = vsel %vm517, %v654, 0
        %661 = vmatpush.bf16.msra.mxu0 0
        %662 = vmatpush.bf16.msra.mxu0 0
        %663 = vmatpush.bf16.msra.mxu0 0
        %664 = vmatpush.bf16.msra.mxu0 0
        %665 = vmatpush.bf16.msra.mxu0 0
        %666 = vmatpush.bf16.msra.mxu0 0
        %667 = vmatpush.bf16.msra.mxu0 0
        %668 = vmatpush.bf16.msra.mxu0 %v656
        %669 = vmatmul.bf16.gmra.mxu0 %v659
        %v670 = vpop.f32.mrf.mxu0
        %v671 = vadd.f32 0.0, %v670
        %v672 = vpop.f32.mrf.mxu0
        %v673 = vadd.f32 0.0, %v672
        %674 = vdwg.mxu0
        %v675 = vrcp.pop %v650
        %v676 = vmul.f32 %v650, %v675
        %v677 = vsub.f32 1.0, %v676
        %v678 = vmul.f32 %v675, %v677
        %v679 = vadd.f32 %v675, %v678
        %vm680 = vweird.f32 %v650
        %vm681 = vweird.f32 %v675
        %vm682 = vmor %vm680, %vm681
        %v683 = vsel %vm682, %v675, %v679
        %v684 = vand.u32 2147483647, %v650
        %vm685 = vcmp.eq.f32.partialorder %v684, 8.507059e+37
        %v686 = vand.u32 %v650, 2147483648
        %v687 = vor.u32 1.1754944e-38, %v686
        %v688 = vsel %vm685, %v687, %v683
        %v689 = vrcp.pop %v653
        %v690 = vmul.f32 %v653, %v689
        %v691 = vsub.f32 1.0, %v690
        %v692 = vmul.f32 %v689, %v691
        %v693 = vadd.f32 %v689, %v692
        %vm694 = vweird.f32 %v653
        %vm695 = vweird.f32 %v689
        %vm696 = vmor %vm694, %vm695
        %v697 = vsel %vm696, %v689, %v693
        %v698 = vand.u32 2147483647, %v653
        %vm699 = vcmp.eq.f32.partialorder %v698, 8.507059e+37
        %v700 = vand.u32 %v653, 2147483648
        %v701 = vor.u32 1.1754944e-38, %v700
        %v702 = vsel %vm699, %v701, %v697
        %v703 = vmul.f32 %v671, %v688
        %v704 = vmul.f32 %v673, %v702
        %v705 = vpack.c.bf16 %v703, %v703
        %v706 = vpack.c.bf16 %v704, %v704
        %709 = vrot.lane.b32.xlu0 %v705, 16
        %v710 = vpop.permute.xlu0 %709
        %711 = vrot.lane.b32.xlu0 %v706, 16
        %v712 = vpop.permute.xlu0 %711
        %vm715 = vcmask 257152
        %716 = vst.msk [vmem:[#allocation2] sm:$0xf] %vm715, %v710
        %717 = vst.msk [vmem:[#allocation2 + $0x4] sm:$0xf] %vm715, %v712
        %v718 = vld [vmem:[#allocation2] sm:$0xf]
        %v719 = vld [vmem:[#allocation2 + $0x4] sm:$0xf]
        %v720 = vld [vmem:[%s4] sm:$0xf]
        %v721 = vld [vmem:[%s4 + $0x4] sm:$0xf]
        %v722 = vld [vmem:[%s4 + $0x8] sm:$0xf]
        %v723 = vld [vmem:[%s4 + $0xc] sm:$0xf]
        %v724 = vld [vmem:[%s5] sm:$0x1]
        %v726 = vperm.slane %v724, 0
        %v730 = vunpack.c.l.b16 %v718
        %v731 = vunpack.c.l.b16 %v719
        %v732 = vpack.c.b16 %v731, %v730
        %v737 = vunpack.c.l.b16 %v720
        %v738 = vunpack.c.l.b16 %v721
        %v739 = vunpack.c.l.b16 %v722
        %v740 = vunpack.c.l.b16 %v723
        %v741 = vpack.c.b16 %v738, %v737
        %v742 = vpack.c.b16 %v740, %v739
        %v746 = vsel %vm495, %v732, 0
        %748 = vmatpush.bf16.msra.mxu0 0
        %749 = vmatpush.bf16.msra.mxu0 0
        %750 = vmatpush.bf16.msra.mxu0 0
        %751 = vmatpush.bf16.msra.mxu0 0
        %752 = vmatpush.bf16.msra.mxu0 0
        %753 = vmatpush.bf16.msra.mxu0 0
        %754 = vmatpush.bf16.msra.mxu0 %v742
        %755 = vmatpush.bf16.msra.mxu0 %v741
        %756 = vmatmul.bf16.gmra.mxu0 %v746
        %v757 = vpop.f32.mrf.mxu0
        %v758 = vadd.f32 %v726, %v757
        %v759 = vpop.f32.mrf.mxu0
        %v760 = vadd.f32 %v726, %v759
        %761 = vdwg.mxu0
        %v762 = vld [vmem:[%s6] sm:$0x1]
        %v763 = vld [vmem:[%s7] sm:$0x1]
        %v764 = vsel %vm495, %v758, 0.0
        %765 = vadd.xlane.f32.xlu0 %v764
        %v766 = vpop.xlane.xlu0 %765
        %v767 = vsel %vm495, %v760, 0.0
        %768 = vadd.xlane.f32.xlu0 %v767
        %v769 = vpop.xlane.xlu0 %768
        %v770 = vrcp.pop 32.0
        %v771 = vmul.f32 32.0, %v770
        %v772 = vsub.f32 1.0, %v771
        %v773 = vmul.f32 %v770, %v772
        %v774 = vadd.f32 %v770, %v773
        %vm775 = vweird.f32 %v770
        %v776 = vsel %vm775, %v770, %v774
        %v777 = vmul.f32 %v766, %v776
        %v778 = vmul.f32 %v769, %v776
        %v779 = vsub.f32 %v758, %v777
        %v780 = vsub.f32 %v760, %v778
        %v781 = vmul.f32 %v779, %v779
        %v782 = vmul.f32 %v780, %v780
        %v783 = vsel %vm495, %v781, 0.0
        %784 = vadd.xlane.f32.xlu0 %v783
        %v785 = vpop.xlane.xlu0 %784
        %v786 = vsel %vm495, %v782, 0.0
        %787 = vadd.xlane.f32.xlu0 %v786
        %v788 = vpop.xlane.xlu0 %787
        %v789 = vmul.f32 %v785, %v776
        %v790 = vmul.f32 %v788, %v776
        %v791 = vadd.f32 %v789, 1e-05
        %v792 = vadd.f32 %v790, 1e-05
        %v793 = vrsqrt.pop %v791
        %v794 = vmul.f32 %v793, %v791
        %v795 = vmul.f32 %v794, %v793
        %v796 = vmul.f32 0.5, %v795
        %v797 = vsub.f32 1.5, %v796
        %v798 = vmul.f32 %v793, %v797
        %vm799 = vweird.f32 %v791
        %vm800 = vweird.f32 %v793
        %vm801 = vmor %vm799, %vm800
        %v802 = vsel %vm801, %v793, %v798
        %v803 = vrsqrt.pop %v792
        %v804 = vmul.f32 %v803, %v792
        %v805 = vmul.f32 %v804, %v803
        %v806 = vmul.f32 0.5, %v805
        %v807 = vsub.f32 1.5, %v806
        %v808 = vmul.f32 %v803, %v807
        %vm809 = vweird.f32 %v792
        %vm810 = vweird.f32 %v803
        %vm811 = vmor %vm809, %vm810
        %v812 = vsel %vm811, %v803, %v808
        %v813 = vmul.f32 %v779, %v802
        %v814 = vmul.f32 %v780, %v812
        %v816 = vperm.slane %v762, 0
        %v818 = vmul.f32 %v813, %v816
        %v819 = vmul.f32 %v814, %v816
        %v821 = vperm.slane %v763, 0
        %v823 = vadd.f32 %v818, %v821
        %v824 = vadd.f32 %v819, %v821
        %v825 = vadd.f32 %v470, %v823
        %v826 = vadd.f32 %v471, %v824
        %v827 = vlaneseq
        %v828 = vshrl.u32 %v827, 7
        %v829 = vadd.s32 %v828, 8
        %v830 = vrot.slane %v825, 7
        %v831 = vrot.slane %v826, 7
        %vm832 = vcmp.lt.s32.totalorder %v828, 1
        %v833 = vsel %vm832, %v830, %v831
        %v834 = vsel %vm832, %v831, %v830
        %v835 = vadd.s32 %v828, 4294967295
        %v836 = vadd.s32 %v829, 4294967295
        %vm837 = vcmp.ge.s32.totalorder %v835, 0
        %vm838 = vcmp.ge.s32.totalorder %v836, 0
        %vm839 = vcmp.lt.s32.totalorder %v835, 16
        %vm840 = vcmp.lt.s32.totalorder %v836, 16
        %vm841 = vmand %vm837, %vm839
        %vm842 = vmand %vm838, %vm840
        %v843 = vsel %vm841, 1, 0
        %v844 = vsel %vm842, 1, 0
        %vm845 = vcmp.eq.s32.totalorder %v843, 1
        %vm846 = vcmp.eq.s32.totalorder %v844, 1
        %v847 = vsel %vm845, %v834, 0.0
        %v848 = vsel %vm846, %v833, 0.0
        %v849 = vrot.slane %v825, 1
        %v850 = vrot.slane %v826, 1
        %vm851 = vcmp.lt.s32.totalorder %v828, 7
        %v852 = vsel %vm851, %v849, %v850
        %v853 = vsel %vm851, %v850, %v849
        %v854 = vadd.s32 %v828, 1
        %v855 = vadd.s32 %v829, 1
        %vm856 = vcmp.ge.s32.totalorder %v854, 0
        %vm857 = vcmp.ge.s32.totalorder %v855, 0
        %vm858 = vcmp.lt.s32.totalorder %v854, 16
        %vm859 = vcmp.lt.s32.totalorder %v855, 16
        %vm860 = vmand %vm856, %vm858
        %vm861 = vmand %vm857, %vm859
        %v862 = vsel %vm860, 1, 0
        %v863 = vsel %vm861, 1, 0
        %vm864 = vcmp.eq.s32.totalorder %v862, 1
        %vm865 = vcmp.eq.s32.totalorder %v863, 1
        %v866 = vsel %vm864, %v852, 0.0
        %v867 = vsel %vm865, %v853, 0.0
        %870 = vrot.lane.b32.xlu0 %v825, 32
        %v871 = vpop.permute.xlu0 %870
        %872 = vrot.lane.b32.xlu0 %v826, 32
        %v873 = vpop.permute.xlu0 %872
        %878 = vrot.lane.b32.xlu0 %v866, 64
        %v879 = vpop.permute.xlu0 %878
        %880 = vrot.lane.b32.xlu0 %v867, 64
        %v881 = vpop.permute.xlu0 %880
        %v884 = vsel %vm495, %v847, %v871
        %v885 = vsel %vm495, %v848, %v873
        %vm886 = vcmask 523264
        %v887 = vsel %vm886, %v884, %v879
        %v888 = vsel %vm886, %v885, %v881
        %v889 = vpack.c.bf16 %v888, %v887
        %v890 = vld [vmem:[%s8] sm:$0xf]
        %v891 = vld [vmem:[%s8 + $0x4] sm:$0xf]
        %v892 = vld [vmem:[%s8 + $0x8] sm:$0xf]
        %v893 = vld [vmem:[%s8 + $0xc] sm:$0xf]
        %v894 = vld [vmem:[%s8 + $0x10] sm:$0xf]
        %v895 = vld [vmem:[%s8 + $0x14] sm:$0xf]
        %v896 = vld [vmem:[%s8 + $0x18] sm:$0xf]
        %v897 = vld [vmem:[%s8 + $0x1c] sm:$0xf]
        %v898 = vld [vmem:[%s8 + $0x20] sm:$0xf]
        %v899 = vld [vmem:[%s8 + $0x24] sm:$0xf]
        %v900 = vld [vmem:[%s8 + $0x28] sm:$0xf]
        %v901 = vld [vmem:[%s8 + $0x2c] sm:$0xf]
        %v902 = vld [vmem:[%s9] sm:$0x1]
        %v904 = vperm.slane %v902, 0
        %v918 = vunpack.c.l.b16 %v890
        %v919 = vunpack.c.l.b16 %v891
        %v920 = vunpack.c.l.b16 %v892
        %v921 = vunpack.c.l.b16 %v893
        %v922 = vunpack.c.l.b16 %v894
        %v923 = vunpack.c.l.b16 %v895
        %v924 = vunpack.c.l.b16 %v896
        %v925 = vunpack.c.l.b16 %v897
        %v926 = vunpack.c.l.b16 %v898
        %v927 = vunpack.c.l.b16 %v899
        %v928 = vunpack.c.l.b16 %v900
        %v929 = vunpack.c.l.b16 %v901
        %v930 = vpack.c.b16 %v919, %v918
        %v931 = vpack.c.b16 %v921, %v920
        %v932 = vpack.c.b16 %v923, %v922
        %v933 = vpack.c.b16 %v925, %v924
        %v934 = vpack.c.b16 %v927, %v926
        %v935 = vpack.c.b16 %v929, %v928
        %vm942 = vcmask 785408
        %v944 = vsel %vm942, %v889, 0
        %946 = vmatpush.bf16.msra.mxu0 0
        %947 = vmatpush.bf16.msra.mxu0 0
        %948 = vmatpush.bf16.msra.mxu0 %v935
        %949 = vmatpush.bf16.msra.mxu0 %v934
        %950 = vmatpush.bf16.msra.mxu0 %v933
        %951 = vmatpush.bf16.msra.mxu0 %v932
        %952 = vmatpush.bf16.msra.mxu0 %v931
        %953 = vmatpush.bf16.msra.mxu0 %v930
        %954 = vmatmul.bf16.gmra.mxu0 %v944
        %v955 = vpop.f32.mrf.mxu0
        %v956 = vadd.f32 %v904, %v955
        %v957 = vpop.f32.mrf.mxu0
        %v958 = vadd.f32 %v904, %v957
        %959 = vdwg.mxu0
        %v960 = vmax.f32 %v956, 0.0
        %v961 = vmax.f32 %v958, 0.0
        %v962 = vpack.c.bf16 %v961, %v960
        %v963 = vld [vmem:[%s10] sm:$0xf]
        %v964 = vld [vmem:[%s10 + $0x4] sm:$0xf]
        %v965 = vld [vmem:[%s10 + $0x8] sm:$0xf]
        %v966 = vld [vmem:[%s10 + $0xc] sm:$0xf]
        %v967 = vld [vmem:[%s10 + $0x10] sm:$0xf]
        %v968 = vld [vmem:[%s10 + $0x14] sm:$0xf]
        %v969 = vld [vmem:[%s10 + $0x18] sm:$0xf]
        %v970 = vld [vmem:[%s10 + $0x1c] sm:$0xf]
        %v979 = vunpack.c.l.b16 %v963
        %v980 = vunpack.c.l.b16 %v964
        %v981 = vunpack.c.l.b16 %v965
        %v982 = vunpack.c.l.b16 %v966
        %v983 = vunpack.c.l.b16 %v967
        %v984 = vunpack.c.l.b16 %v968
        %v985 = vunpack.c.l.b16 %v969
        %v986 = vunpack.c.l.b16 %v970
        %v987 = vpack.c.b16 %v980, %v979
        %v988 = vpack.c.b16 %v982, %v981
        %v989 = vpack.c.b16 %v984, %v983
        %v990 = vpack.c.b16 %v986, %v985
        %v996 = vsel %vm886, %v962, 0
        %998 = vmatpush.bf16.msra.mxu0 0
        %999 = vmatpush.bf16.msra.mxu0 0
        %1000 = vmatpush.bf16.msra.mxu0 0
        %1001 = vmatpush.bf16.msra.mxu0 0
        %1002 = vmatpush.bf16.msra.mxu0 %v990
        %1003 = vmatpush.bf16.msra.mxu0 %v989
        %1004 = vmatpush.bf16.msra.mxu0 %v988
        %1005 = vmatpush.bf16.msra.mxu0 %v987
        %1006 = vmatmul.bf16.gmra.mxu0 %v996
        %v1007 = vpop.f32.mrf.mxu0
        %v1008 = vadd.f32 0.0, %v1007
        %v1009 = vpop.f32.mrf.mxu0
        %v1010 = vadd.f32 0.0, %v1009
        %1011 = vdwg.mxu0
        %v1012 = vrot.slane %v1008, 7
        %v1013 = vrot.slane %v1010, 7
        %v1014 = vsel %vm832, %v1012, %v1013
        %v1015 = vsel %vm832, %v1013, %v1012
        %v1016 = vsel %vm845, %v1015, 0.0
        %v1017 = vsel %vm846, %v1014, 0.0
        %s1018 = scalar_lea.vmem %s10, 32
        %v1019 = vld [vmem:[%s1018] sm:$0xf]
        %v1020 = vld [vmem:[%s1018 + $0x4] sm:$0xf]
        %v1021 = vld [vmem:[%s1018 + $0x8] sm:$0xf]
        %v1022 = vld [vmem:[%s1018 + $0xc] sm:$0xf]
        %v1023 = vld [vmem:[%s1018 + $0x10] sm:$0xf]
        %v1024 = vld [vmem:[%s1018 + $0x14] sm:$0xf]
        %v1025 = vld [vmem:[%s1018 + $0x18] sm:$0xf]
        %v1026 = vld [vmem:[%s1018 + $0x1c] sm:$0xf]
        %v1035 = vunpack.c.l.b16 %v1019
        %v1036 = vunpack.c.l.b16 %v1020
        %v1037 = vunpack.c.l.b16 %v1021
        %v1038 = vunpack.c.l.b16 %v1022
        %v1039 = vunpack.c.l.b16 %v1023
        %v1040 = vunpack.c.l.b16 %v1024
        %v1041 = vunpack.c.l.b16 %v1025
        %v1042 = vunpack.c.l.b16 %v1026
        %v1043 = vpack.c.b16 %v1036, %v1035
        %v1044 = vpack.c.b16 %v1038, %v1037
        %v1045 = vpack.c.b16 %v1040, %v1039
        %v1046 = vpack.c.b16 %v1042, %v1041
        %1051 = vmatpush.bf16.msra.mxu0 0
        %1052 = vmatpush.bf16.msra.mxu0 0
        %1053 = vmatpush.bf16.msra.mxu0 0
        %1054 = vmatpush.bf16.msra.mxu0 0
        %1055 = vmatpush.bf16.msra.mxu0 %v1046
        %1056 = vmatpush.bf16.msra.mxu0 %v1045
        %1057 = vmatpush.bf16.msra.mxu0 %v1044
        %1058 = vmatpush.bf16.msra.mxu0 %v1043
        %1059 = vmatmul.bf16.gmra.mxu0 %v996
        %v1060 = vpop.f32.mrf.mxu0
        %v1061 = vadd.f32 0.0, %v1060
        %v1062 = vpop.f32.mrf.mxu0
        %v1063 = vadd.f32 0.0, %v1062
        %1064 = vdwg.mxu0
        %v1065 = vadd.f32 %v1016, %v1061
        %v1066 = vadd.f32 %v1017, %v1063
        %s1067 = scalar_lea.vmem %s10, 64
        %v1068 = vld [vmem:[%s1067] sm:$0xf]
        %v1069 = vld [vmem:[%s1067 + $0x4] sm:$0xf]
        %v1070 = vld [vmem:[%s1067 + $0x8] sm:$0xf]
        %v1071 = vld [vmem:[%s1067 + $0xc] sm:$0xf]
        %v1072 = vld [vmem:[%s1067 + $0x10] sm:$0xf]
        %v1073 = vld [vmem:[%s1067 + $0x14] sm:$0xf]
        %v1074 = vld [vmem:[%s1067 + $0x18] sm:$0xf]
        %v1075 = vld [vmem:[%s1067 + $0x1c] sm:$0xf]
        %v1084 = vunpack.c.l.b16 %v1068
        %v1085 = vunpack.c.l.b16 %v1069
        %v1086 = vunpack.c.l.b16 %v1070
        %v1087 = vunpack.c.l.b16 %v1071
        %v1088 = vunpack.c.l.b16 %v1072
        %v1089 = vunpack.c.l.b16 %v1073
        %v1090 = vunpack.c.l.b16 %v1074
        %v1091 = vunpack.c.l.b16 %v1075
        %v1092 = vpack.c.b16 %v1085, %v1084
        %v1093 = vpack.c.b16 %v1087, %v1086
        %v1094 = vpack.c.b16 %v1089, %v1088
        %v1095 = vpack.c.b16 %v1091, %v1090
        %1100 = vmatpush.bf16.msra.mxu0 0
        %1101 = vmatpush.bf16.msra.mxu0 0
        %1102 = vmatpush.bf16.msra.mxu0 0
        %1103 = vmatpush.bf16.msra.mxu0 0
        %1104 = vmatpush.bf16.msra.mxu0 %v1095
        %1105 = vmatpush.bf16.msra.mxu0 %v1094
        %1106 = vmatpush.bf16.msra.mxu0 %v1093
        %1107 = vmatpush.bf16.msra.mxu0 %v1092
        %1108 = vmatmul.bf16.gmra.mxu0 %v996
        %v1109 = vpop.f32.mrf.mxu0
        %v1110 = vadd.f32 0.0, %v1109
        %v1111 = vpop.f32.mrf.mxu0
        %v1112 = vadd.f32 0.0, %v1111
        %1113 = vdwg.mxu0
        %v1114 = vrot.slane %v1110, 1
        %v1115 = vrot.slane %v1112, 1
        %v1116 = vsel %vm851, %v1114, %v1115
        %v1117 = vsel %vm851, %v1115, %v1114
        %v1118 = vsel %vm864, %v1116, 0.0
        %v1119 = vsel %vm865, %v1117, 0.0
        %v1120 = vadd.f32 %v1065, %v1118
        %v1121 = vadd.f32 %v1066, %v1119
        %v1122 = vld [vmem:[%s11] sm:$0x1]
        %v1124 = vperm.slane %v1122, 0
        %v1126 = vadd.f32 %v1120, %v1124
        %v1127 = vadd.f32 %v1121, %v1124
        %v1128 = vld [vmem:[%s12] sm:$0x1]
        %v1129 = vld [vmem:[%s13] sm:$0x1]
        %v1130 = vsel %vm495, %v1126, 0.0
        %1131 = vadd.xlane.f32.xlu0 %v1130
        %v1132 = vpop.xlane.xlu0 %1131
        %v1133 = vsel %vm495, %v1127, 0.0
        %1134 = vadd.xlane.f32.xlu0 %v1133
        %v1135 = vpop.xlane.xlu0 %1134
        %v1136 = vmul.f32 %v1132, %v776
        %v1137 = vmul.f32 %v1135, %v776
        %v1138 = vsub.f32 %v1126, %v1136
        %v1139 = vsub.f32 %v1127, %v1137
        %v1140 = vmul.f32 %v1138, %v1138
        %v1141 = vmul.f32 %v1139, %v1139
        %v1142 = vsel %vm495, %v1140, 0.0
        %1143 = vadd.xlane.f32.xlu0 %v1142
        %v1144 = vpop.xlane.xlu0 %1143
        %v1145 = vsel %vm495, %v1141, 0.0
        %1146 = vadd.xlane.f32.xlu0 %v1145
        %v1147 = vpop.xlane.xlu0 %1146
        %v1148 = vmul.f32 %v1144, %v776
        %v1149 = vmul.f32 %v1147, %v776
        %v1150 = vadd.f32 %v1148, 1e-05
        %v1151 = vadd.f32 %v1149, 1e-05
        %v1152 = vrsqrt.pop %v1150
        %v1153 = vmul.f32 %v1152, %v1150
        %v1154 = vmul.f32 %v1153, %v1152
        %v1155 = vmul.f32 0.5, %v1154
        %v1156 = vsub.f32 1.5, %v1155
        %v1157 = vmul.f32 %v1152, %v1156
        %vm1158 = vweird.f32 %v1150
        %vm1159 = vweird.f32 %v1152
        %vm1160 = vmor %vm1158, %vm1159
        %v1161 = vsel %vm1160, %v1152, %v1157
        %v1162 = vrsqrt.pop %v1151
        %v1163 = vmul.f32 %v1162, %v1151
        %v1164 = vmul.f32 %v1163, %v1162
        %v1165 = vmul.f32 0.5, %v1164
        %v1166 = vsub.f32 1.5, %v1165
        %v1167 = vmul.f32 %v1162, %v1166
        %vm1168 = vweird.f32 %v1151
        %vm1169 = vweird.f32 %v1162
        %vm1170 = vmor %vm1168, %vm1169
        %v1171 = vsel %vm1170, %v1162, %v1167
        %v1172 = vmul.f32 %v1138, %v1161
        %v1173 = vmul.f32 %v1139, %v1171
        %v1175 = vperm.slane %v1128, 0
        %v1177 = vmul.f32 %v1172, %v1175
        %v1178 = vmul.f32 %v1173, %v1175
        %v1180 = vperm.slane %v1129, 0
        %v1182 = vadd.f32 %v1177, %v1180
        %v1183 = vadd.f32 %v1178, %v1180
        %v1184 = vadd.f32 %v825, %v1182
        %v1185 = vadd.f32 %v826, %v1183
        %1186 = vst.msk [vmem:[%s461] sm:$0xff] %vm495, %v1184
        %1187 = vst.msk [vmem:[%s461 + $0x8] sm:$0xff] %vm495, %v1185
        %s1188 = sand.u32 %s335, 1
        %s1189 = scalar_lea.sflag [#allocation4], %s1188
        %s1190 = sand.u32 %s335, 1
        %s1191 = smul.addr %s1190, 16
        %s1192 = scalar_lea.vmem [#allocation3], %s1191
        // Predicated region
        $region77: #{fft_block_pallas.1} parent=75 // pred_check
          %p1193 = pneg %p345
        $region78: #{fft_block_pallas.1} parent=75 // pred_check_branch
          %1195 = sbr.rel (%p1193) target = $region80
        $region79: #{fft_block_pallas.1} parent=75 // pred_region
          %s1196 = smul.u32 2, %s28
          %1198 = vsyncadd %s1189, 0
          %s1199 = smul.addr %s1196, 8
          %s1200 = scalar_lea.hbm %s14, %s1199
          %s1201 = sshll.u32 %s1192, 4
          %s1202 = int_to_ptr.vmem [resolvable:$true] %s1201
          %s1203 = sshll.u32 %s1200, 4
          %s1204 = int_to_ptr.hbm [resolvable:$true] %s1203
          %1209 = dma.vmem_to_hbm [thread:$0]  %s1202, 256, %s1204, %s1189, 128, 128, 8
        $region80: #{fft_block_pallas.1} parent=75 // pred_fallthru
          _
      $region76: #{fft_block_pallas.1} parent=5 // pred_fallthru
        _
      %p1210 = scmp.le.s32.totalorder 2, %s23
      // Predicated region
      $region81: #{fft_block_pallas.1} parent=5 // pred_check
        %p1211 = pneg %p1210
      $region82: #{fft_block_pallas.1} parent=5 // pred_check_branch
        %1213 = sbr.rel (%p1211) target = $region84
      $region83: #{fft_block_pallas.1} parent=5 // pred_region
        %s1214 = ssub.s32 %s23, 2
        // Predicated region
        $region85: #{fft_block_pallas.1} parent=83 // pred_check
          %p1215 = pneg %p351
        $region86: #{fft_block_pallas.1} parent=83 // pred_check_branch
          %1217 = sbr.rel (%p1215) target = $region88
        $region87: #{fft_block_pallas.1} parent=83 // pred_region
          %s1218 = sand.u32 %s336, 1
          %s1219 = scalar_lea.sflag [#allocation4], %s1218
          %s1220 = sand.u32 %s336, 1
          %s1221 = smul.addr %s1220, 16
          %s1222 = scalar_lea.vmem [#allocation3], %s1221
          %1224 = dma.done %s1219, 256
        $region88: #{fft_block_pallas.1} parent=83 // pred_fallthru
          _
      $region84: #{fft_block_pallas.1} parent=5 // pred_fallthru
        _
    $region6: #{fft_block_pallas.1} parent=1 // loop_footer
      %s27 = sadd.s32 1, %s23
    $region7: #{fft_block_pallas.1} parent=1 // loop_footer_branch
      %22 = sbr.rel target = $region3
    $region8: #{fft_block_pallas.1} parent=1 // loop_exit
      _
    %1225 = vsyncpa [#allocation4], 1
    %s1226 = scalar_lea.sflag [#allocation4], 1
    %1227 = vsyncpa %s1226, 1

</llo_original>
